<compile_context>
chip_gen: v6e
topology: v6e:2x2x1
jax: 0.10.0
libtpu: 0.0.40
codegen_flags: <defaults>
</compile_context>

<pallas_src>
import functools
import math

import jax
import jax.numpy as jnp
from jax.experimental import pallas as pl
from jax.experimental.pallas import tpu as pltpu

EMBED_SIZE = 128


def _flash_attention_kernel(xq_ref, xkv_ref, wq_ref, wkv_ref, o_ref,
                            q_sc, m_sc, l_sc, acc_sc):
    """One (batch-block, q-block, kv-block) grid step of single-head attention.

    xq_ref:  (Bt, Tq, E)  x rows feeding the Q projection of this q-block
    xkv_ref: (Bt, Tk, E)  x rows feeding the K/V projections of this kv-block
    wq_ref:  (E, E)       pre-transposed query weight, pre-scaled by 1/sqrt(E)
    wkv_ref: (E, 2E)      pre-transposed fused [Wk.T | Wv.T]
    o_ref:   (Bt, Tq, E)  output block (resident across the kv axis)
    q_sc:    (Bt, Tq, E)  projected (scaled) queries, input dtype
    m_sc/l_sc: (Bt, Tq, 1) f32 online-softmax running max / denominator
    acc_sc:  (Bt, Tq, E)  f32 running weighted-V accumulator
    """
    kv_i = pl.program_id(2)
    Bt, Tq, E = xq_ref.shape
    _, Tk, _ = xkv_ref.shape
    dt = xq_ref.dtype

    @pl.when(kv_i == 0)
    def _init():
        # Q projection once per (b, q-block): single MXU pass, M = Bt*Tq.
        xq2d = xq_ref[...].reshape(Bt * Tq, E)
        q = jnp.dot(xq2d, wq_ref[...], preferred_element_type=jnp.float32)
        q_sc[...] = q.reshape(Bt, Tq, E).astype(dt)
        m_sc[...] = jnp.full_like(m_sc, -jnp.inf)
        l_sc[...] = jnp.zeros_like(l_sc)
        acc_sc[...] = jnp.zeros_like(acc_sc)

    # Fused K/V projection for this KV tile: one MXU pass, M = Bt*Tk, N = 2E.
    xkv2d = xkv_ref[...].reshape(Bt * Tk, E)
    kv = jnp.dot(xkv2d, wkv_ref[...], preferred_element_type=jnp.float32)
    kv = kv.reshape(Bt, Tk, 2 * E)
    k = kv[:, :, :E].astype(dt)
    v = kv[:, :, E:].astype(dt)

    # Scores (1/sqrt(E) already folded into Wq); contraction over the last
    # axis of both operands, so no transposed-K copy is materialized.
    s = jnp.einsum("bqe,bke->bqk", q_sc[...], k,
                   preferred_element_type=jnp.float32)           # (Bt,Tq,Tk) f32

    # Online-softmax update, all f32.
    m_prev = m_sc[...]
    m_new = jnp.maximum(m_prev, jnp.max(s, axis=-1, keepdims=True))
    alpha = jnp.exp(m_prev - m_new)
    p = jnp.exp(s - m_new)
    l_sc[...] = alpha * l_sc[...] + jnp.sum(p, axis=-1, keepdims=True)
    acc_sc[...] = alpha * acc_sc[...] + jnp.einsum(
        "bqk,bke->bqe", p.astype(dt), v, preferred_element_type=jnp.float32)
    m_sc[...] = m_new

    @pl.when(kv_i == pl.num_programs(2) - 1)
    def _finalize():
        # Exact divide (not approx reciprocal) on the small final tensor --
        # this was the source of the previous correctness failure.
        o_ref[...] = (acc_sc[...] / l_sc[...]).astype(o_ref.dtype)


# ----------------------------- tiling helpers ------------------------------ #

def _vmem_capacity_bytes():
    try:
        return int(pltpu.get_tpu_info().vmem_capacity_bytes)
    except Exception:
        return 64 << 20        # conservative: v7x per-TensorCore VMEM


def _num_tensorcores():
    try:
        d = jax.devices()[0]
        for attr in ("num_cores", "core_count"):
            v = getattr(d, attr, None)
            if isinstance(v, int) and v > 0:
                return v
    except Exception:
        pass
    return 1


def _pick_seq_tile(S, cap):
    """Largest divisor of S that is <= cap and a multiple of 8 (else S)."""
    if S <= cap:
        return S
    best = None
    for d in range(8, cap + 1, 8):
        if S % d == 0:
            best = d
    return best if best is not None else S


def _step_vmem_bytes(Bt, Tq, Tk, E, itemsize):
    xq = 2 * Bt * Tq * E * itemsize            # double-buffered q-rows block
    xkv = 2 * Bt * Tk * E * itemsize           # double-buffered kv-rows block
    out = 2 * Bt * Tq * E * itemsize           # double-buffered output block
    w = 2 * (E * E + 2 * E * E) * itemsize     # resident weights (2x headroom)
    scr = Bt * Tq * E * itemsize + Bt * Tq * (E + 2) * 4
    inter = 3 * Bt * Tk * E * 4 + 3 * Bt * Tq * Tk * 4
    return xq + xkv + out + w + scr + inter + (4 << 20)


def _pick_block_batch(B, q_blocks, Tq, Tk, E, itemsize, vmem_budget, cores):
    fitting = [bt for bt in range(1, B + 1)
               if B % bt == 0
               and _step_vmem_bytes(bt, Tq, Tk, E, itemsize) <= vmem_budget]
    if not fitting:
        return 1
    if cores >= 2 and B >= 2:
        # Only when the chip really has 2 TensorCores: keep >= 2 parallel steps.
        two_step = [bt for bt in fitting if (B // bt) * q_blocks >= 2]
        if two_step:
            return max(two_step)
    return max(fitting)


# -------------------------------- wrapper ---------------------------------- #

@functools.partial(jax.jit, static_argnames=("tq", "tk"))
def self_attention(x, w_keys, w_queries, w_values, *, tq=None, tk=None):
    """x: (B, S, E); weights: (E, E) in PyTorch nn.Linear [out, in] layout."""
    B, S, E = x.shape
    assert E == w_keys.shape[1] == w_queries.shape[1] == w_values.shape[1]
    itemsize = jnp.dtype(x.dtype).itemsize

    # Hoisted (jitted) weight prep: pre-transpose to [in, out] so x @ W
    # reproduces nn.Linear's x @ W.T; fold the softmax scale into Wq; fuse
    # K/V weights into one lane-dense (E, 2E) slab.
    w_q = (w_queries.T * (1.0 / math.sqrt(E))).astype(x.dtype)              # (E, E)
    w_kv = jnp.concatenate([w_keys.T, w_values.T], axis=1).astype(x.dtype)  # (E, 2E)

    vmem_cap = _vmem_capacity_bytes()
    vmem_budget = int(vmem_cap * 0.75)
    cores = _num_tensorcores()

    Tq = tq if tq is not None else _pick_seq_tile(S, 256)
    Tk = tk if tk is not None else _pick_seq_tile(S, 512)
    assert S % Tq == 0 and S % Tk == 0, (S, Tq, Tk)
    q_blocks = S // Tq
    Bt = _pick_block_batch(B, q_blocks, Tq, Tk, E, itemsize, vmem_budget, cores)

    grid = (B // Bt, q_blocks, S // Tk)

    xq_spec = pl.BlockSpec((Bt, Tq, E), lambda b, qi, ki: (b, qi, 0))
    xkv_spec = pl.BlockSpec((Bt, Tk, E), lambda b, qi, ki: (b, ki, 0))
    wq_spec = pl.BlockSpec((E, E), lambda b, qi, ki: (0, 0))          # resident
    wkv_spec = pl.BlockSpec((E, 2 * E), lambda b, qi, ki: (0, 0))     # resident
    o_spec = pl.BlockSpec((Bt, Tq, E), lambda b, qi, ki: (b, qi, 0))  # acc over ki

    vmem_limit = int(min(max(_step_vmem_bytes(Bt, Tq, Tk, E, itemsize),
                             32 << 20),
                         vmem_budget))

    return pl.pallas_call(
        _flash_attention_kernel,
        out_shape=jax.ShapeDtypeStruct((B, S, E), x.dtype),
        grid_spec=pltpu.PrefetchScalarGridSpec(
            num_scalar_prefetch=0,
            grid=grid,
            in_specs=[xq_spec, xkv_spec, wq_spec, wkv_spec],
            out_specs=o_spec,
            scratch_shapes=[
                pltpu.VMEM((Bt, Tq, E), x.dtype),      # scaled queries
                pltpu.VMEM((Bt, Tq, 1), jnp.float32),  # running max
                pltpu.VMEM((Bt, Tq, 1), jnp.float32),  # running denominator
                pltpu.VMEM((Bt, Tq, E), jnp.float32),  # running output acc
            ],
        ),
        compiler_params=pltpu.CompilerParams(
            dimension_semantics=("parallel", "parallel", "arbitrary"),
            vmem_limit_bytes=vmem_limit,
        ),
    )(x, x, w_q, w_kv)


def _reference(x, w_keys, w_queries, w_values):
    k = x @ w_keys.T
    q = x @ w_queries.T
    v = x @ w_values.T
    scores = jnp.einsum("bqe,bke->bqk", q, k) / math.sqrt(x.shape[-1])
    attn = jax.nn.softmax(scores, axis=-1)
    return jnp.einsum("bqk,bke->bqe", attn, v)


if __name__ == "__main__":
    key = jax.random.PRNGKey(0)
    k_x, k_wk, k_wq, k_wv, k_x2 = jax.random.split(key, 5)

    B, S, E = 8, 8, EMBED_SIZE
    bound = 1.0 / math.sqrt(E)
    w_keys = jax.random.uniform(k_wk, (E, E), jnp.float32, -bound, bound)
    w_queries = jax.random.uniform(k_wq, (E, E), jnp.float32, -bound, bound)
    w_values = jax.random.uniform(k_wv, (E, E), jnp.float32, -bound, bound)

    # Test 1: the module's natural small shape (single KV tile per q-block).
    x = jax.random.normal(k_x, (B, S, E), dtype=jnp.float32)
    out = jax.block_until_ready(self_attention(x, w_keys, w_queries, w_values))
    ref = _reference(x, w_keys, w_queries, w_values)
    assert out.shape == (B, S, E)
    err = float(jnp.max(jnp.abs(out - ref)))
    assert jnp.allclose(out, ref, atol=1e-4, rtol=1e-4), err

    # Test 2: force multiple q / kv tiles to exercise the online-softmax
    # accumulation across the "arbitrary" kv grid axis.
    B2, S2 = 2, 64
    x2 = jax.random.normal(k_x2, (B2, S2, E), dtype=jnp.float32)
    out2 = jax.block_until_ready(
        self_attention(x2, w_keys, w_queries, w_values, tq=32, tk=16))
    ref2 = _reference(x2, w_keys, w_queries, w_values)
    err2 = float(jnp.max(jnp.abs(out2 - ref2)))
    assert out2.shape == (B2, S2, E)
    assert jnp.allclose(out2, ref2, atol=1e-4, rtol=1e-4), err2

    print("KERNEL_OK")
</pallas_src>

<mosaic_0001>
module attributes {stable_mosaic.version = 11 : i64} {
  func.func @_flash_attention_kernel(%arg0: i32, %arg1: i32, %arg2: i32, %arg3: memref<8x8x128xf32, #tpu.memory_space<vmem>>, %arg4: memref<8x8x128xf32, #tpu.memory_space<vmem>>, %arg5: memref<128x128xf32, #tpu.memory_space<vmem>>, %arg6: memref<128x256xf32, #tpu.memory_space<vmem>>, %arg7: memref<8x8x128xf32, #tpu.memory_space<vmem>>, %arg8: memref<8x8x128xf32, #tpu.memory_space<vmem>>, %arg9: memref<8x8x1xf32, #tpu.memory_space<vmem>>, %arg10: memref<8x8x1xf32, #tpu.memory_space<vmem>>, %arg11: memref<8x8x128xf32, #tpu.memory_space<vmem>>) attributes {dimension_semantics = [#tpu.dimension_semantics<parallel>, #tpu.dimension_semantics<parallel>, #tpu.dimension_semantics<arbitrary>], iteration_bounds = array<i64: 1, 1, 1>, scalar_prefetch = 0 : i64, scratch_operands = 4 : i64, tpu.core_type = #tpu.core_type<tc>, window_params = [{transform_indices = @transform_0, window_bounds = array<i64: 8, 8, 128>}, {transform_indices = @transform_1, window_bounds = array<i64: 8, 8, 128>}, {pipeline_mode = #tpu.pipeline_mode<synchronous>, transform_indices = @transform_2, window_bounds = array<i64: 128, 128>}, {pipeline_mode = #tpu.pipeline_mode<synchronous>, transform_indices = @transform_3, window_bounds = array<i64: 128, 256>}, {transform_indices = @transform_4, window_bounds = array<i64: 8, 8, 128>}]} {
    %c0_i32 = arith.constant 0 : i32
    %0 = arith.cmpi eq, %arg2, %c0_i32 : i32
    %1 = arith.extui %0 : i1 to i32
    %c0_i32_0 = arith.constant 0 : i32
    %2 = arith.cmpi ne, %1, %c0_i32_0 : i32
    scf.if %2 {
      %c0_32 = arith.constant 0 : index
      %c0_33 = arith.constant 0 : index
      %c0_34 = arith.constant 0 : index
      %37 = vector.load %arg3[%c0_32, %c0_33, %c0_34] : memref<8x8x128xf32, #tpu.memory_space<vmem>>, vector<8x8x128xf32>
      %38 = vector.shape_cast %37 : vector<8x8x128xf32> to vector<64x128xf32>
      %c0_35 = arith.constant 0 : index
      %c0_36 = arith.constant 0 : index
      %39 = vector.load %arg5[%c0_35, %c0_36] : memref<128x128xf32, #tpu.memory_space<vmem>>, vector<128x128xf32>
      %cst_37 = arith.constant dense<0.000000e+00> : vector<64x128xf32>
      %40 = tpu.matmul %38, %39, %cst_37 {dimension_numbers = #tpu.dot_dimension_numbers<[1], [0], [0], [1], [0, 0, 1, 1], [], []>} : vector<64x128xf32>, vector<128x128xf32>, vector<64x128xf32> -> vector<64x128xf32>
      %41 = vector.shape_cast %40 : vector<64x128xf32> to vector<8x8x128xf32>
      %c0_38 = arith.constant 0 : index
      %c0_39 = arith.constant 0 : index
      %c0_40 = arith.constant 0 : index
      %42 = vector.load %arg8[%c0_38, %c0_39, %c0_40] : memref<8x8x128xf32, #tpu.memory_space<vmem>>, vector<8x8x128xf32>
      tpu.vector_store %arg8[%c0_38, %c0_39, %c0_40], %41 {strides = array<i32>} : memref<8x8x128xf32, #tpu.memory_space<vmem>>, vector<8x8x128xf32>,
      %cst_41 = arith.constant 0xFF800000 : f32
      %43 = vector.broadcast %cst_41 : f32 to vector<8x8x1xf32>
      %c0_42 = arith.constant 0 : index
      %c0_43 = arith.constant 0 : index
      %c0_44 = arith.constant 0 : index
      %44 = vector.load %arg9[%c0_42, %c0_43, %c0_44] : memref<8x8x1xf32, #tpu.memory_space<vmem>>, vector<8x8x1xf32>
      tpu.vector_store %arg9[%c0_42, %c0_43, %c0_44], %43 {strides = array<i32>} : memref<8x8x1xf32, #tpu.memory_space<vmem>>, vector<8x8x1xf32>,
      %cst_45 = arith.constant 0.000000e+00 : f32
      %45 = vector.broadcast %cst_45 : f32 to vector<8x8x1xf32>
      %c0_46 = arith.constant 0 : index
      %c0_47 = arith.constant 0 : index
      %c0_48 = arith.constant 0 : index
      %46 = vector.load %arg10[%c0_46, %c0_47, %c0_48] : memref<8x8x1xf32, #tpu.memory_space<vmem>>, vector<8x8x1xf32>
      tpu.vector_store %arg10[%c0_46, %c0_47, %c0_48], %45 {strides = array<i32>} : memref<8x8x1xf32, #tpu.memory_space<vmem>>, vector<8x8x1xf32>,
      %cst_49 = arith.constant 0.000000e+00 : f32
      %47 = vector.broadcast %cst_49 : f32 to vector<8x8x128xf32>
      %c0_50 = arith.constant 0 : index
      %c0_51 = arith.constant 0 : index
      %c0_52 = arith.constant 0 : index
      %48 = vector.load %arg11[%c0_50, %c0_51, %c0_52] : memref<8x8x128xf32, #tpu.memory_space<vmem>>, vector<8x8x128xf32>
      tpu.vector_store %arg11[%c0_50, %c0_51, %c0_52], %47 {strides = array<i32>} : memref<8x8x128xf32, #tpu.memory_space<vmem>>, vector<8x8x128xf32>,
    } else {
    }
    %c0 = arith.constant 0 : index
    %c0_1 = arith.constant 0 : index
    %c0_2 = arith.constant 0 : index
    %3 = vector.load %arg4[%c0, %c0_1, %c0_2] : memref<8x8x128xf32, #tpu.memory_space<vmem>>, vector<8x8x128xf32>
    %4 = vector.shape_cast %3 : vector<8x8x128xf32> to vector<64x128xf32>
    %c0_3 = arith.constant 0 : index
    %c0_4 = arith.constant 0 : index
    %5 = vector.load %arg6[%c0_3, %c0_4] : memref<128x256xf32, #tpu.memory_space<vmem>>, vector<128x256xf32>
    %cst = arith.constant dense<0.000000e+00> : vector<64x256xf32>
    %6 = tpu.matmul %4, %5, %cst {dimension_numbers = #tpu.dot_dimension_numbers<[1], [0], [0], [1], [0, 0, 1, 1], [], []>} : vector<64x128xf32>, vector<128x256xf32>, vector<64x256xf32> -> vector<64x256xf32>
    %7 = vector.shape_cast %6 : vector<64x256xf32> to vector<8x8x256xf32>
    %8 = vector.extract_strided_slice %7 {offsets = [0, 0, 0], sizes = [8, 8, 128], strides = [1, 1, 1]} : vector<8x8x256xf32> to vector<8x8x128xf32>
    %9 = vector.extract_strided_slice %7 {offsets = [0, 0, 128], sizes = [8, 8, 128], strides = [1, 1, 1]} : vector<8x8x256xf32> to vector<8x8x128xf32>
    %c0_5 = arith.constant 0 : index
    %c0_6 = arith.constant 0 : index
    %c0_7 = arith.constant 0 : index
    %10 = vector.load %arg8[%c0_5, %c0_6, %c0_7] : memref<8x8x128xf32, #tpu.memory_space<vmem>>, vector<8x8x128xf32>
    "tpu.trace_start"() <{level = 10 : i32, message = "bqe,bke->bqk"}> : () -> ()
    %cst_8 = arith.constant dense<0.000000e+00> : vector<8x8x8xf32>
    %11 = tpu.matmul %10, %8, %cst_8 {dimension_numbers = #tpu.dot_dimension_numbers<[2], [2], [1], [1], [0, 0, 0, 1, 1, 1], [0], [0]>} : vector<8x8x128xf32>, vector<8x8x128xf32>, vector<8x8x8xf32> -> vector<8x8x8xf32>
    "tpu.trace_stop"() : () -> ()
    %c0_9 = arith.constant 0 : index
    %c0_10 = arith.constant 0 : index
    %c0_11 = arith.constant 0 : index
    %12 = vector.load %arg9[%c0_9, %c0_10, %c0_11] : memref<8x8x1xf32, #tpu.memory_space<vmem>>, vector<8x8x1xf32>
    %cst_12 = arith.constant dense<0xFF800000> : vector<8x8xf32>
    %13 = vector.multi_reduction <maximumf>, %11, %cst_12 [2] : vector<8x8x8xf32> to vector<8x8xf32>
    %14 = vector.shape_cast %13 : vector<8x8xf32> to vector<8x8x1xf32>
    %15 = arith.maximumf %12, %14 : vector<8x8x1xf32>
    %16 = arith.subf %12, %15 : vector<8x8x1xf32>
    %17 = math.exp %16 : vector<8x8x1xf32>
    %18 = vector.broadcast %15 : vector<8x8x1xf32> to vector<8x8x8xf32>
    %19 = arith.subf %11, %18 : vector<8x8x8xf32>
    %20 = math.exp %19 : vector<8x8x8xf32>
    %c0_13 = arith.constant 0 : index
    %c0_14 = arith.constant 0 : index
    %c0_15 = arith.constant 0 : index
    %21 = vector.load %arg10[%c0_13, %c0_14, %c0_15] : memref<8x8x1xf32, #tpu.memory_space<vmem>>, vector<8x8x1xf32>
    %22 = arith.mulf %17, %21 : vector<8x8x1xf32>
    %cst_16 = arith.constant dense<0.000000e+00> : vector<8x8xf32>
    %23 = vector.multi_reduction <add>, %20, %cst_16 [2] : vector<8x8x8xf32> to vector<8x8xf32>
    %24 = vector.shape_cast %23 : vector<8x8xf32> to vector<8x8x1xf32>
    %25 = arith.addf %22, %24 : vector<8x8x1xf32>
    %c0_17 = arith.constant 0 : index
    %c0_18 = arith.constant 0 : index
    %c0_19 = arith.constant 0 : index
    %26 = vector.load %arg10[%c0_17, %c0_18, %c0_19] : memref<8x8x1xf32, #tpu.memory_space<vmem>>, vector<8x8x1xf32>
    tpu.vector_store %arg10[%c0_17, %c0_18, %c0_19], %25 {strides = array<i32>} : memref<8x8x1xf32, #tpu.memory_space<vmem>>, vector<8x8x1xf32>,
    %c0_20 = arith.constant 0 : index
    %c0_21 = arith.constant 0 : index
    %c0_22 = arith.constant 0 : index
    %27 = vector.load %arg11[%c0_20, %c0_21, %c0_22] : memref<8x8x128xf32, #tpu.memory_space<vmem>>, vector<8x8x128xf32>
    %28 = vector.broadcast %17 : vector<8x8x1xf32> to vector<8x8x128xf32>
    %29 = arith.mulf %28, %27 : vector<8x8x128xf32>
    "tpu.trace_start"() <{level = 10 : i32, message = "bqk,bke->bqe"}> : () -> ()
    %cst_23 = arith.constant dense<0.000000e+00> : vector<8x8x128xf32>
    %30 = tpu.matmul %20, %9, %cst_23 {dimension_numbers = #tpu.dot_dimension_numbers<[2], [1], [1], [2], [0, 0, 0, 1, 1, 2], [0], [0]>} : vector<8x8x8xf32>, vector<8x8x128xf32>, vector<8x8x128xf32> -> vector<8x8x128xf32>
    "tpu.trace_stop"() : () -> ()
    %31 = arith.addf %29, %30 : vector<8x8x128xf32>
    %c0_24 = arith.constant 0 : index
    %c0_25 = arith.constant 0 : index
    %c0_26 = arith.constant 0 : index
    %32 = vector.load %arg11[%c0_24, %c0_25, %c0_26] : memref<8x8x128xf32, #tpu.memory_space<vmem>>, vector<8x8x128xf32>
    tpu.vector_store %arg11[%c0_24, %c0_25, %c0_26], %31 {strides = array<i32>} : memref<8x8x128xf32, #tpu.memory_space<vmem>>, vector<8x8x128xf32>,
    %c0_27 = arith.constant 0 : index
    %c0_28 = arith.constant 0 : index
    %c0_29 = arith.constant 0 : index
    %33 = vector.load %arg9[%c0_27, %c0_28, %c0_29] : memref<8x8x1xf32, #tpu.memory_space<vmem>>, vector<8x8x1xf32>
    tpu.vector_store %arg9[%c0_27, %c0_28, %c0_29], %15 {strides = array<i32>} : memref<8x8x1xf32, #tpu.memory_space<vmem>>, vector<8x8x1xf32>,
    %c0_i32_30 = arith.constant 0 : i32
    %34 = arith.cmpi eq, %arg2, %c0_i32_30 : i32
    %35 = arith.extui %34 : i1 to i32
    %c0_i32_31 = arith.constant 0 : i32
    %36 = arith.cmpi ne, %35, %c0_i32_31 : i32
    scf.if %36 {
      %c0_32 = arith.constant 0 : index
      %c0_33 = arith.constant 0 : index
      %c0_34 = arith.constant 0 : index
      %37 = vector.load %arg11[%c0_32, %c0_33, %c0_34] : memref<8x8x128xf32, #tpu.memory_space<vmem>>, vector<8x8x128xf32>
      %c0_35 = arith.constant 0 : index
      %c0_36 = arith.constant 0 : index
      %c0_37 = arith.constant 0 : index
      %38 = vector.load %arg10[%c0_35, %c0_36, %c0_37] : memref<8x8x1xf32, #tpu.memory_space<vmem>>, vector<8x8x1xf32>
      %39 = vector.broadcast %38 : vector<8x8x1xf32> to vector<8x8x128xf32>
      %40 = arith.divf %37, %39 : vector<8x8x128xf32>
      %c0_38 = arith.constant 0 : index
      %c0_39 = arith.constant 0 : index
      %c0_40 = arith.constant 0 : index
      %41 = vector.load %arg7[%c0_38, %c0_39, %c0_40] : memref<8x8x128xf32, #tpu.memory_space<vmem>>, vector<8x8x128xf32>
      tpu.vector_store %arg7[%c0_38, %c0_39, %c0_40], %40 {strides = array<i32>} : memref<8x8x128xf32, #tpu.memory_space<vmem>>, vector<8x8x128xf32>,
    } else {
    }
    return
  }
  func.func @transform_0(%arg0: i32, %arg1: i32, %arg2: i32) -> (i32, i32, i32) {
    %c0_i32 = arith.constant 0 : i32
    %c0_i32_0 = arith.constant 0 : i32
    return %arg0, %arg1, %c0_i32 : i32, i32, i32
  }
  func.func @transform_1(%arg0: i32, %arg1: i32, %arg2: i32) -> (i32, i32, i32) {
    %c0_i32 = arith.constant 0 : i32
    %c0_i32_0 = arith.constant 0 : i32
    return %arg0, %arg2, %c0_i32 : i32, i32, i32
  }
  func.func @transform_2(%arg0: i32, %arg1: i32, %arg2: i32) -> (i32, i32) {
    %c0_i32 = arith.constant 0 : i32
    %c0_i32_0 = arith.constant 0 : i32
    %c0_i32_1 = arith.constant 0 : i32
    return %c0_i32, %c0_i32_0 : i32, i32
  }
  func.func @transform_3(%arg0: i32, %arg1: i32, %arg2: i32) -> (i32, i32) {
    %c0_i32 = arith.constant 0 : i32
    %c0_i32_0 = arith.constant 0 : i32
    %c0_i32_1 = arith.constant 0 : i32
    return %c0_i32, %c0_i32_0 : i32, i32
  }
  func.func @transform_4(%arg0: i32, %arg1: i32, %arg2: i32) -> (i32, i32, i32) {
    %c0_i32 = arith.constant 0 : i32
    %c0_i32_0 = arith.constant 0 : i32
    return %arg0, %arg1, %c0_i32 : i32, i32, i32
  }
}

</mosaic_0001>

<llo_original>
// kernel: self_attention.1
$region0: #{self_attention.1}
  #allocation0 [shape = 'u32[]', space=smem, size = 0x4, offset = 0x4, fixed_abs, tag = 'smem constant byte address 0x4 - core index']
  #allocation1 [shape = 'u32[144,128]{1,0:T(1,128)}', space=vmem, size = 0x12000, scoped, tag = 'internal scratch']
  #allocation2 [shape = 'f32[8,8,128]{2,1,0:T(8,128)}', space=vmem, size = 0x8000, scoped, tag = 'scratch operand']
  #allocation3 [shape = 'f32[8,8,1]{2,1,0:T(8,128)}', space=vmem, size = 0x8000, scoped, tag = 'scratch operand']
  #allocation4 [shape = 'f32[8,8,1]{2,1,0:T(8,128)}', space=vmem, size = 0x8000, scoped, tag = 'scratch operand']
  #allocation5 [shape = 'f32[8,8,128]{2,1,0:T(8,128)}', space=vmem, size = 0x8000, scoped, tag = 'scratch operand']
  %s0 = inlined_call_operand.vmem [shape: f32[8,8,128], index: 0, kind: input, shape index: {}, may-alias: {0,1}]
  %s1 = inlined_call_operand.vmem [shape: f32[8,8,128], index: 1, kind: input, shape index: {}, may-alias: {0,1}]
  %s2 = inlined_call_operand.vmem [shape: f32[128,128], index: 2, kind: input, shape index: {}]
  %s3 = inlined_call_operand.vmem [shape: f32[128,256], index: 3, kind: input, shape index: {}]
  %s4 = inlined_call_operand.hbm [shape: f32[8,8,128], index: 4, kind: output, shape index: {}]
  %s5 = sld [smem:[#allocation0]]
  $region34: #{self_attention.1} parent=0
    _
  %s7 = ssub.s32 1, %s5
  %s8 = scalar_select 0, %s7, %s5
  $region1: #{self_attention.1} parent=0
    #allocation6 [shape = 'u8[32768]{0}', space=vmem, size = 0x8000, scoped, tag = 'output window, operand 0, single buffered']
    #allocation7 [shape = 's32[1]{0}', space=sflag, size = 0x4, scoped, tag = 'scoped memory for self_attention.1']
    %9 = vsyncpa [#allocation7], 0
    // Predicated region
    $region2: #{self_attention.1} parent=1 // pred_check
      _
    $region3: #{self_attention.1} parent=1 // pred_check_branch
      %11 = sbr.rel (0) target = $region5
    $region4: #{self_attention.1} parent=1 // pred_region
      _
    $region5: #{self_attention.1} parent=1 // pred_fallthru
      _
    // Predicated region
    $region6: #{self_attention.1} parent=1 // pred_check
      _
    $region7: #{self_attention.1} parent=1 // pred_check_branch
      %13 = sbr.rel (0) target = $region9
    $region8: #{self_attention.1} parent=1 // pred_region
      _
    $region9: #{self_attention.1} parent=1 // pred_fallthru
      _
    // Predicated region
    $region10: #{self_attention.1} parent=1 // pred_check
      _
    $region11: #{self_attention.1} parent=1 // pred_check_branch
      %15 = sbr.rel (0) target = $region13
    $region12: #{self_attention.1} parent=1 // pred_region
      _
    $region13: #{self_attention.1} parent=1 // pred_fallthru
      _
    // Predicated region
    $region14: #{self_attention.1} parent=1 // pred_check
      _
    $region15: #{self_attention.1} parent=1 // pred_check_branch
      %17 = sbr.rel (0) target = $region17
    $region16: #{self_attention.1} parent=1 // pred_region
      _
    $region17: #{self_attention.1} parent=1 // pred_fallthru
      _
    %p18 = scmp.eq.s32.totalorder 0, 0
    // Predicated region
    $region18: #{self_attention.1} parent=1 // pred_check
      %p19 = pneg %p18
    $region19: #{self_attention.1} parent=1 // pred_check_branch
      %21 = sbr.rel (%p19) target = $region21
    $region20: #{self_attention.1} parent=1 // pred_region
      %v22 = vld [vmem:[%s0] sm:$0xff]
      %v23 = vld [vmem:[%s0 + $0x8] sm:$0xff]
      %v24 = vld [vmem:[%s0 + $0x10] sm:$0xff]
      %v25 = vld [vmem:[%s0 + $0x18] sm:$0xff]
      %v26 = vld [vmem:[%s0 + $0x20] sm:$0xff]
      %v27 = vld [vmem:[%s0 + $0x28] sm:$0xff]
      %v28 = vld [vmem:[%s0 + $0x30] sm:$0xff]
      %v29 = vld [vmem:[%s0 + $0x38] sm:$0xff]
      %v30 = vld [vmem:[%s2] sm:$0xff]
      %v31 = vld [vmem:[%s2 + $0x8] sm:$0xff]
      %v32 = vld [vmem:[%s2 + $0x10] sm:$0xff]
      %v33 = vld [vmem:[%s2 + $0x18] sm:$0xff]
      %v34 = vld [vmem:[%s2 + $0x20] sm:$0xff]
      %v35 = vld [vmem:[%s2 + $0x28] sm:$0xff]
      %v36 = vld [vmem:[%s2 + $0x30] sm:$0xff]
      %v37 = vld [vmem:[%s2 + $0x38] sm:$0xff]
      %v38 = vld [vmem:[%s2 + $0x40] sm:$0xff]
      %v39 = vld [vmem:[%s2 + $0x48] sm:$0xff]
      %v40 = vld [vmem:[%s2 + $0x50] sm:$0xff]
      %v41 = vld [vmem:[%s2 + $0x58] sm:$0xff]
      %v42 = vld [vmem:[%s2 + $0x60] sm:$0xff]
      %v43 = vld [vmem:[%s2 + $0x68] sm:$0xff]
      %v44 = vld [vmem:[%s2 + $0x70] sm:$0xff]
      %v45 = vld [vmem:[%s2 + $0x78] sm:$0xff]
      %46 = vmatprep.subr.mxu0 0.0
      %47 = vmatpush1.msra.mxu0 %v45
      %48 = vmatprep.subr.mxu0 0.0
      %49 = vmatpush1.msra.mxu0 %v44
      %50 = vmatprep.subr.mxu0 0.0
      %51 = vmatpush1.msra.mxu0 %v43
      %52 = vmatprep.subr.mxu0 0.0
      %53 = vmatpush1.msra.mxu0 %v42
      %54 = vmatprep.subr.mxu0 0.0
      %55 = vmatpush1.msra.mxu0 %v41
      %56 = vmatprep.subr.mxu0 0.0
      %57 = vmatpush1.msra.mxu0 %v40
      %58 = vmatprep.subr.mxu0 0.0
      %59 = vmatpush1.msra.mxu0 %v39
      %60 = vmatprep.subr.mxu0 0.0
      %61 = vmatpush1.msra.mxu0 %v38
      %62 = vmatprep.subr.mxu0 0.0
      %63 = vmatpush1.msra.mxu0 %v37
      %64 = vmatprep.subr.mxu0 0.0
      %65 = vmatpush1.msra.mxu0 %v36
      %66 = vmatprep.subr.mxu0 0.0
      %67 = vmatpush1.msra.mxu0 %v35
      %68 = vmatprep.subr.mxu0 0.0
      %69 = vmatpush1.msra.mxu0 %v34
      %70 = vmatprep.subr.mxu0 0.0
      %71 = vmatpush1.msra.mxu0 %v33
      %72 = vmatprep.subr.mxu0 0.0
      %73 = vmatpush1.msra.mxu0 %v32
      %74 = vmatprep.subr.mxu0 0.0
      %75 = vmatpush1.msra.mxu0 %v31
      %76 = vmatprep.subr.mxu0 0.0
      %77 = vmatpush1.msra.mxu0 %v30
      %78 = vmatprep.subr.mxu0 0.0
      %79 = vmatpush2.msra.mxu0 0.0
      %80 = vmatprep.subr.mxu0 0.0
      %81 = vmatpush2.msra.mxu0 0.0
      %82 = vmatprep.subr.mxu0 0.0
      %83 = vmatpush2.msra.mxu0 0.0
      %84 = vmatprep.subr.mxu0 0.0
      %85 = vmatpush2.msra.mxu0 0.0
      %86 = vmatprep.subr.mxu0 0.0
      %87 = vmatpush2.msra.mxu0 0.0
      %88 = vmatprep.subr.mxu0 0.0
      %89 = vmatpush2.msra.mxu0 0.0
      %90 = vmatprep.subr.mxu0 0.0
      %91 = vmatpush2.msra.mxu0 0.0
      %92 = vmatprep.subr.mxu0 0.0
      %93 = vmatpush2.msra.mxu0 0.0
      %94 = vmatprep.subr.mxu0 0.0
      %95 = vmatpush2.msra.mxu0 0.0
      %96 = vmatprep.subr.mxu0 0.0
      %97 = vmatpush2.msra.mxu0 0.0
      %98 = vmatprep.subr.mxu0 0.0
      %99 = vmatpush2.msra.mxu0 0.0
      %100 = vmatprep.subr.mxu0 0.0
      %101 = vmatpush2.msra.mxu0 0.0
      %102 = vmatprep.subr.mxu0 0.0
      %103 = vmatpush2.msra.mxu0 0.0
      %104 = vmatprep.subr.mxu0 0.0
      %105 = vmatpush2.msra.mxu0 0.0
      %106 = vmatprep.subr.mxu0 0.0
      %107 = vmatpush2.msra.mxu0 0.0
      %108 = vmatprep.subr.mxu0 0.0
      %109 = vmatpush2.msra.mxu0 0.0
      %110 = vmatprep.mubr.f32.mxu0 0.0
      %111 = vmatmul.mubr.f32.gmra.mxu0 %v22
      %v112 = vpop.f32.mrf.mxu0
      %v113 = vadd.f32 0.0, %v112
      %v114 = vpop.f32.mrf.mxu0
      %115 = vmatprep.mubr.f32.mxu0 0.0
      %116 = vmatmul.mubr.f32.gmra.mxu0 %v23
      %v117 = vpop.f32.mrf.mxu0
      %v118 = vadd.f32 0.0, %v117
      %v119 = vpop.f32.mrf.mxu0
      %120 = vmatprep.mubr.f32.mxu0 0.0
      %121 = vmatmul.mubr.f32.gmra.mxu0 %v24
      %v122 = vpop.f32.mrf.mxu0
      %v123 = vadd.f32 0.0, %v122
      %v124 = vpop.f32.mrf.mxu0
      %125 = vmatprep.mubr.f32.mxu0 0.0
      %126 = vmatmul.mubr.f32.gmra.mxu0 %v25
      %v127 = vpop.f32.mrf.mxu0
      %v128 = vadd.f32 0.0, %v127
      %v129 = vpop.f32.mrf.mxu0
      %130 = vmatprep.mubr.f32.mxu0 0.0
      %131 = vmatmul.mubr.f32.gmra.mxu0 %v26
      %v132 = vpop.f32.mrf.mxu0
      %v133 = vadd.f32 0.0, %v132
      %v134 = vpop.f32.mrf.mxu0
      %135 = vmatprep.mubr.f32.mxu0 0.0
      %136 = vmatmul.mubr.f32.gmra.mxu0 %v27
      %v137 = vpop.f32.mrf.mxu0
      %v138 = vadd.f32 0.0, %v137
      %v139 = vpop.f32.mrf.mxu0
      %140 = vmatprep.mubr.f32.mxu0 0.0
      %141 = vmatmul.mubr.f32.gmra.mxu0 %v28
      %v142 = vpop.f32.mrf.mxu0
      %v143 = vadd.f32 0.0, %v142
      %v144 = vpop.f32.mrf.mxu0
      %145 = vmatprep.mubr.f32.mxu0 0.0
      %146 = vmatmul.mubr.f32.gmra.mxu0 %v29
      %v147 = vpop.f32.mrf.mxu0
      %v148 = vadd.f32 0.0, %v147
      %v149 = vpop.f32.mrf.mxu0
      %150 = vdwg.mxu0
      %151 = vst [vmem:[#allocation2] sm:$0xff] %v113
      %152 = vst [vmem:[#allocation2 + $0x8] sm:$0xff] %v118
      %153 = vst [vmem:[#allocation2 + $0x10] sm:$0xff] %v123
      %154 = vst [vmem:[#allocation2 + $0x18] sm:$0xff] %v128
      %155 = vst [vmem:[#allocation2 + $0x20] sm:$0xff] %v133
      %156 = vst [vmem:[#allocation2 + $0x28] sm:$0xff] %v138
      %157 = vst [vmem:[#allocation2 + $0x30] sm:$0xff] %v143
      %158 = vst [vmem:[#allocation2 + $0x38] sm:$0xff] %v148
      %vm159 = vcmask 7168
      %160 = vst.msk [vmem:[#allocation3] sm:$0xff] %vm159, -inf
      %161 = vst.msk [vmem:[#allocation3 + $0x8] sm:$0xff] %vm159, -inf
      %162 = vst.msk [vmem:[#allocation3 + $0x10] sm:$0xff] %vm159, -inf
      %163 = vst.msk [vmem:[#allocation3 + $0x18] sm:$0xff] %vm159, -inf
      %164 = vst.msk [vmem:[#allocation3 + $0x20] sm:$0xff] %vm159, -inf
      %165 = vst.msk [vmem:[#allocation3 + $0x28] sm:$0xff] %vm159, -inf
      %166 = vst.msk [vmem:[#allocation3 + $0x30] sm:$0xff] %vm159, -inf
      %167 = vst.msk [vmem:[#allocation3 + $0x38] sm:$0xff] %vm159, -inf
      %168 = vst.msk [vmem:[#allocation4] sm:$0xff] %vm159, 0.0
      %169 = vst.msk [vmem:[#allocation4 + $0x8] sm:$0xff] %vm159, 0.0
      %170 = vst.msk [vmem:[#allocation4 + $0x10] sm:$0xff] %vm159, 0.0
      %171 = vst.msk [vmem:[#allocation4 + $0x18] sm:$0xff] %vm159, 0.0
      %172 = vst.msk [vmem:[#allocation4 + $0x20] sm:$0xff] %vm159, 0.0
      %173 = vst.msk [vmem:[#allocation4 + $0x28] sm:$0xff] %vm159, 0.0
      %174 = vst.msk [vmem:[#allocation4 + $0x30] sm:$0xff] %vm159, 0.0
      %175 = vst.msk [vmem:[#allocation4 + $0x38] sm:$0xff] %vm159, 0.0
      %176 = vst [vmem:[#allocation5] sm:$0xff] 0.0
      %177 = vst [vmem:[#allocation5 + $0x8] sm:$0xff] 0.0
      %178 = vst [vmem:[#allocation5 + $0x10] sm:$0xff] 0.0
      %179 = vst [vmem:[#allocation5 + $0x18] sm:$0xff] 0.0
      %180 = vst [vmem:[#allocation5 + $0x20] sm:$0xff] 0.0
      %181 = vst [vmem:[#allocation5 + $0x28] sm:$0xff] 0.0
      %182 = vst [vmem:[#allocation5 + $0x30] sm:$0xff] 0.0
      %183 = vst [vmem:[#allocation5 + $0x38] sm:$0xff] 0.0
    $region21: #{self_attention.1} parent=1 // pred_fallthru
      _
    %v184 = vld [vmem:[%s1] sm:$0xff]
    %v185 = vld [vmem:[%s1 + $0x8] sm:$0xff]
    %v186 = vld [vmem:[%s1 + $0x10] sm:$0xff]
    %v187 = vld [vmem:[%s1 + $0x18] sm:$0xff]
    %v188 = vld [vmem:[%s1 + $0x20] sm:$0xff]
    %v189 = vld [vmem:[%s1 + $0x28] sm:$0xff]
    %v190 = vld [vmem:[%s1 + $0x30] sm:$0xff]
    %v191 = vld [vmem:[%s1 + $0x38] sm:$0xff]
    %v192 = vld [vmem:[%s3] sm:$0xff]
    %v193 = vld [vmem:[%s3 + $0x8] sm:$0xff]
    %v194 = vld [vmem:[%s3 + $0x10] sm:$0xff]
    %v195 = vld [vmem:[%s3 + $0x18] sm:$0xff]
    %v196 = vld [vmem:[%s3 + $0x20] sm:$0xff]
    %v197 = vld [vmem:[%s3 + $0x28] sm:$0xff]
    %v198 = vld [vmem:[%s3 + $0x30] sm:$0xff]
    %v199 = vld [vmem:[%s3 + $0x38] sm:$0xff]
    %v200 = vld [vmem:[%s3 + $0x40] sm:$0xff]
    %v201 = vld [vmem:[%s3 + $0x48] sm:$0xff]
    %v202 = vld [vmem:[%s3 + $0x50] sm:$0xff]
    %v203 = vld [vmem:[%s3 + $0x58] sm:$0xff]
    %v204 = vld [vmem:[%s3 + $0x60] sm:$0xff]
    %v205 = vld [vmem:[%s3 + $0x68] sm:$0xff]
    %v206 = vld [vmem:[%s3 + $0x70] sm:$0xff]
    %v207 = vld [vmem:[%s3 + $0x78] sm:$0xff]
    %v208 = vld [vmem:[%s3 + $0x80] sm:$0xff]
    %v209 = vld [vmem:[%s3 + $0x88] sm:$0xff]
    %v210 = vld [vmem:[%s3 + $0x90] sm:$0xff]
    %v211 = vld [vmem:[%s3 + $0x98] sm:$0xff]
    %v212 = vld [vmem:[%s3 + $0xa0] sm:$0xff]
    %v213 = vld [vmem:[%s3 + $0xa8] sm:$0xff]
    %v214 = vld [vmem:[%s3 + $0xb0] sm:$0xff]
    %v215 = vld [vmem:[%s3 + $0xb8] sm:$0xff]
    %v216 = vld [vmem:[%s3 + $0xc0] sm:$0xff]
    %v217 = vld [vmem:[%s3 + $0xc8] sm:$0xff]
    %v218 = vld [vmem:[%s3 + $0xd0] sm:$0xff]
    %v219 = vld [vmem:[%s3 + $0xd8] sm:$0xff]
    %v220 = vld [vmem:[%s3 + $0xe0] sm:$0xff]
    %v221 = vld [vmem:[%s3 + $0xe8] sm:$0xff]
    %v222 = vld [vmem:[%s3 + $0xf0] sm:$0xff]
    %v223 = vld [vmem:[%s3 + $0xf8] sm:$0xff]
    %224 = vmatprep.subr.mxu0 %v223
    %225 = vmatpush1.msra.mxu0 %v222
    %226 = vmatprep.subr.mxu0 %v221
    %227 = vmatpush1.msra.mxu0 %v220
    %228 = vmatprep.subr.mxu0 %v219
    %229 = vmatpush1.msra.mxu0 %v218
    %230 = vmatprep.subr.mxu0 %v217
    %231 = vmatpush1.msra.mxu0 %v216
    %232 = vmatprep.subr.mxu0 %v215
    %233 = vmatpush1.msra.mxu0 %v214
    %234 = vmatprep.subr.mxu0 %v213
    %235 = vmatpush1.msra.mxu0 %v212
    %236 = vmatprep.subr.mxu0 %v211
    %237 = vmatpush1.msra.mxu0 %v210
    %238 = vmatprep.subr.mxu0 %v209
    %239 = vmatpush1.msra.mxu0 %v208
    %240 = vmatprep.subr.mxu0 %v207
    %241 = vmatpush1.msra.mxu0 %v206
    %242 = vmatprep.subr.mxu0 %v205
    %243 = vmatpush1.msra.mxu0 %v204
    %244 = vmatprep.subr.mxu0 %v203
    %245 = vmatpush1.msra.mxu0 %v202
    %246 = vmatprep.subr.mxu0 %v201
    %247 = vmatpush1.msra.mxu0 %v200
    %248 = vmatprep.subr.mxu0 %v199
    %249 = vmatpush1.msra.mxu0 %v198
    %250 = vmatprep.subr.mxu0 %v197
    %251 = vmatpush1.msra.mxu0 %v196
    %252 = vmatprep.subr.mxu0 %v195
    %253 = vmatpush1.msra.mxu0 %v194
    %254 = vmatprep.subr.mxu0 %v193
    %255 = vmatpush1.msra.mxu0 %v192
    %256 = vmatprep.subr.mxu0 0.0
    %257 = vmatpush2.msra.mxu0 0.0
    %258 = vmatprep.subr.mxu0 0.0
    %259 = vmatpush2.msra.mxu0 0.0
    %260 = vmatprep.subr.mxu0 0.0
    %261 = vmatpush2.msra.mxu0 0.0
    %262 = vmatprep.subr.mxu0 0.0
    %263 = vmatpush2.msra.mxu0 0.0
    %264 = vmatprep.subr.mxu0 0.0
    %265 = vmatpush2.msra.mxu0 0.0
    %266 = vmatprep.subr.mxu0 0.0
    %267 = vmatpush2.msra.mxu0 0.0
    %268 = vmatprep.subr.mxu0 0.0
    %269 = vmatpush2.msra.mxu0 0.0
    %270 = vmatprep.subr.mxu0 0.0
    %271 = vmatpush2.msra.mxu0 0.0
    %272 = vmatprep.subr.mxu0 0.0
    %273 = vmatpush2.msra.mxu0 0.0
    %274 = vmatprep.subr.mxu0 0.0
    %275 = vmatpush2.msra.mxu0 0.0
    %276 = vmatprep.subr.mxu0 0.0
    %277 = vmatpush2.msra.mxu0 0.0
    %278 = vmatprep.subr.mxu0 0.0
    %279 = vmatpush2.msra.mxu0 0.0
    %280 = vmatprep.subr.mxu0 0.0
    %281 = vmatpush2.msra.mxu0 0.0
    %282 = vmatprep.subr.mxu0 0.0
    %283 = vmatpush2.msra.mxu0 0.0
    %284 = vmatprep.subr.mxu0 0.0
    %285 = vmatpush2.msra.mxu0 0.0
    %286 = vmatprep.subr.mxu0 0.0
    %287 = vmatpush2.msra.mxu0 0.0
    %288 = vmatprep.mubr.f32.mxu0 0.0
    %289 = vmatmul.mubr.f32.gmra.mxu0 %v184
    %v290 = vpop.f32.mrf.mxu0
    %v291 = vadd.f32 0.0, %v290
    %v292 = vpop.f32.mrf.mxu0
    %v293 = vadd.f32 0.0, %v292
    %294 = vmatprep.mubr.f32.mxu0 0.0
    %295 = vmatmul.mubr.f32.gmra.mxu0 %v185
    %v296 = vpop.f32.mrf.mxu0
    %v297 = vadd.f32 0.0, %v296
    %v298 = vpop.f32.mrf.mxu0
    %v299 = vadd.f32 0.0, %v298
    %300 = vmatprep.mubr.f32.mxu0 0.0
    %301 = vmatmul.mubr.f32.gmra.mxu0 %v186
    %v302 = vpop.f32.mrf.mxu0
    %v303 = vadd.f32 0.0, %v302
    %v304 = vpop.f32.mrf.mxu0
    %v305 = vadd.f32 0.0, %v304
    %306 = vmatprep.mubr.f32.mxu0 0.0
    %307 = vmatmul.mubr.f32.gmra.mxu0 %v187
    %v308 = vpop.f32.mrf.mxu0
    %v309 = vadd.f32 0.0, %v308
    %v310 = vpop.f32.mrf.mxu0
    %v311 = vadd.f32 0.0, %v310
    %312 = vmatprep.mubr.f32.mxu0 0.0
    %313 = vmatmul.mubr.f32.gmra.mxu0 %v188
    %v314 = vpop.f32.mrf.mxu0
    %v315 = vadd.f32 0.0, %v314
    %v316 = vpop.f32.mrf.mxu0
    %v317 = vadd.f32 0.0, %v316
    %318 = vmatprep.mubr.f32.mxu0 0.0
    %319 = vmatmul.mubr.f32.gmra.mxu0 %v189
    %v320 = vpop.f32.mrf.mxu0
    %v321 = vadd.f32 0.0, %v320
    %v322 = vpop.f32.mrf.mxu0
    %v323 = vadd.f32 0.0, %v322
    %324 = vmatprep.mubr.f32.mxu0 0.0
    %325 = vmatmul.mubr.f32.gmra.mxu0 %v190
    %v326 = vpop.f32.mrf.mxu0
    %v327 = vadd.f32 0.0, %v326
    %v328 = vpop.f32.mrf.mxu0
    %v329 = vadd.f32 0.0, %v328
    %330 = vmatprep.mubr.f32.mxu0 0.0
    %331 = vmatmul.mubr.f32.gmra.mxu0 %v191
    %v332 = vpop.f32.mrf.mxu0
    %v333 = vadd.f32 0.0, %v332
    %v334 = vpop.f32.mrf.mxu0
    %v335 = vadd.f32 0.0, %v334
    %336 = vdwg.mxu0
    %v337 = vld [vmem:[#allocation2] sm:$0xff]
    %v338 = vld [vmem:[#allocation2 + $0x8] sm:$0xff]
    %v339 = vld [vmem:[#allocation2 + $0x10] sm:$0xff]
    %v340 = vld [vmem:[#allocation2 + $0x18] sm:$0xff]
    %v341 = vld [vmem:[#allocation2 + $0x20] sm:$0xff]
    %v342 = vld [vmem:[#allocation2 + $0x28] sm:$0xff]
    %v343 = vld [vmem:[#allocation2 + $0x30] sm:$0xff]
    %v344 = vld [vmem:[#allocation2 + $0x38] sm:$0xff]
    %345 = vmatprep.subr.mxu0 0.0
    %346 = vmatpush1.xpose.msra.mxu0 0.0
    %347 = vmatprep.subr.mxu0 0.0
    %348 = vmatpush1.xpose.msra.mxu0 0.0
    %349 = vmatprep.subr.mxu0 0.0
    %350 = vmatpush1.xpose.msra.mxu0 0.0
    %351 = vmatprep.subr.mxu0 0.0
    %352 = vmatpush1.xpose.msra.mxu0 0.0
    %353 = vmatprep.subr.mxu0 0.0
    %354 = vmatpush1.xpose.msra.mxu0 0.0
    %355 = vmatprep.subr.mxu0 0.0
    %356 = vmatpush1.xpose.msra.mxu0 0.0
    %357 = vmatprep.subr.mxu0 0.0
    %358 = vmatpush1.xpose.msra.mxu0 0.0
    %359 = vmatprep.subr.mxu0 0.0
    %360 = vmatpush1.xpose.msra.mxu0 0.0
    %361 = vmatprep.subr.mxu0 0.0
    %362 = vmatpush1.xpose.msra.mxu0 0.0
    %363 = vmatprep.subr.mxu0 0.0
    %364 = vmatpush1.xpose.msra.mxu0 0.0
    %365 = vmatprep.subr.mxu0 0.0
    %366 = vmatpush1.xpose.msra.mxu0 0.0
    %367 = vmatprep.subr.mxu0 0.0
    %368 = vmatpush1.xpose.msra.mxu0 0.0
    %369 = vmatprep.subr.mxu0 0.0
    %370 = vmatpush1.xpose.msra.mxu0 0.0
    %371 = vmatprep.subr.mxu0 0.0
    %372 = vmatpush1.xpose.msra.mxu0 0.0
    %373 = vmatprep.subr.mxu0 0.0
    %374 = vmatpush1.xpose.msra.mxu0 0.0
    %375 = vmatprep.subr.mxu0 0.0
    %376 = vmatpush1.xpose.msra.mxu0 %v291
    %377 = vmatprep.subr.mxu0 0.0
    %378 = vmatpush2.xpose.msra.mxu0 0.0
    %379 = vmatprep.subr.mxu0 0.0
    %380 = vmatpush2.xpose.msra.mxu0 0.0
    %381 = vmatprep.subr.mxu0 0.0
    %382 = vmatpush2.xpose.msra.mxu0 0.0
    %383 = vmatprep.subr.mxu0 0.0
    %384 = vmatpush2.xpose.msra.mxu0 0.0
    %385 = vmatprep.subr.mxu0 0.0
    %386 = vmatpush2.xpose.msra.mxu0 0.0
    %387 = vmatprep.subr.mxu0 0.0
    %388 = vmatpush2.xpose.msra.mxu0 0.0
    %389 = vmatprep.subr.mxu0 0.0
    %390 = vmatpush2.xpose.msra.mxu0 0.0
    %391 = vmatprep.subr.mxu0 0.0
    %392 = vmatpush2.xpose.msra.mxu0 0.0
    %393 = vmatprep.subr.mxu0 0.0
    %394 = vmatpush2.xpose.msra.mxu0 0.0
    %395 = vmatprep.subr.mxu0 0.0
    %396 = vmatpush2.xpose.msra.mxu0 0.0
    %397 = vmatprep.subr.mxu0 0.0
    %398 = vmatpush2.xpose.msra.mxu0 0.0
    %399 = vmatprep.subr.mxu0 0.0
    %400 = vmatpush2.xpose.msra.mxu0 0.0
    %401 = vmatprep.subr.mxu0 0.0
    %402 = vmatpush2.xpose.msra.mxu0 0.0
    %403 = vmatprep.subr.mxu0 0.0
    %404 = vmatpush2.xpose.msra.mxu0 0.0
    %405 = vmatprep.subr.mxu0 0.0
    %406 = vmatpush2.xpose.msra.mxu0 0.0
    %407 = vmatprep.subr.mxu0 0.0
    %408 = vmatpush2.xpose.msra.mxu0 0.0
    %409 = vmatprep.mubr.f32.mxu0 0.0
    %410 = vmatmul.mubr.f32.gmra.mxu0 %v337
    %v411 = vpop.f32.mrf.mxu0
    %v412 = vadd.f32 0.0, %v411
    %v413 = vpop.f32.mrf.mxu0
    %414 = vdwg.mxu0
    %415 = vmatprep.subr.mxu0 0.0
    %416 = vmatpush1.xpose.msra.mxu0 0.0
    %417 = vmatprep.subr.mxu0 0.0
    %418 = vmatpush1.xpose.msra.mxu0 0.0
    %419 = vmatprep.subr.mxu0 0.0
    %420 = vmatpush1.xpose.msra.mxu0 0.0
    %421 = vmatprep.subr.mxu0 0.0
    %422 = vmatpush1.xpose.msra.mxu0 0.0
    %423 = vmatprep.subr.mxu0 0.0
    %424 = vmatpush1.xpose.msra.mxu0 0.0
    %425 = vmatprep.subr.mxu0 0.0
    %426 = vmatpush1.xpose.msra.mxu0 0.0
    %427 = vmatprep.subr.mxu0 0.0
    %428 = vmatpush1.xpose.msra.mxu0 0.0
    %429 = vmatprep.subr.mxu0 0.0
    %430 = vmatpush1.xpose.msra.mxu0 0.0
    %431 = vmatprep.subr.mxu0 0.0
    %432 = vmatpush1.xpose.msra.mxu0 0.0
    %433 = vmatprep.subr.mxu0 0.0
    %434 = vmatpush1.xpose.msra.mxu0 0.0
    %435 = vmatprep.subr.mxu0 0.0
    %436 = vmatpush1.xpose.msra.mxu0 0.0
    %437 = vmatprep.subr.mxu0 0.0
    %438 = vmatpush1.xpose.msra.mxu0 0.0
    %439 = vmatprep.subr.mxu0 0.0
    %440 = vmatpush1.xpose.msra.mxu0 0.0
    %441 = vmatprep.subr.mxu0 0.0
    %442 = vmatpush1.xpose.msra.mxu0 0.0
    %443 = vmatprep.subr.mxu0 0.0
    %444 = vmatpush1.xpose.msra.mxu0 0.0
    %445 = vmatprep.subr.mxu0 0.0
    %446 = vmatpush1.xpose.msra.mxu0 %v297
    %447 = vmatprep.subr.mxu0 0.0
    %448 = vmatpush2.xpose.msra.mxu0 0.0
    %449 = vmatprep.subr.mxu0 0.0
    %450 = vmatpush2.xpose.msra.mxu0 0.0
    %451 = vmatprep.subr.mxu0 0.0
    %452 = vmatpush2.xpose.msra.mxu0 0.0
    %453 = vmatprep.subr.mxu0 0.0
    %454 = vmatpush2.xpose.msra.mxu0 0.0
    %455 = vmatprep.subr.mxu0 0.0
    %456 = vmatpush2.xpose.msra.mxu0 0.0
    %457 = vmatprep.subr.mxu0 0.0
    %458 = vmatpush2.xpose.msra.mxu0 0.0
    %459 = vmatprep.subr.mxu0 0.0
    %460 = vmatpush2.xpose.msra.mxu0 0.0
    %461 = vmatprep.subr.mxu0 0.0
    %462 = vmatpush2.xpose.msra.mxu0 0.0
    %463 = vmatprep.subr.mxu0 0.0
    %464 = vmatpush2.xpose.msra.mxu0 0.0
    %465 = vmatprep.subr.mxu0 0.0
    %466 = vmatpush2.xpose.msra.mxu0 0.0
    %467 = vmatprep.subr.mxu0 0.0
    %468 = vmatpush2.xpose.msra.mxu0 0.0
    %469 = vmatprep.subr.mxu0 0.0
    %470 = vmatpush2.xpose.msra.mxu0 0.0
    %471 = vmatprep.subr.mxu0 0.0
    %472 = vmatpush2.xpose.msra.mxu0 0.0
    %473 = vmatprep.subr.mxu0 0.0
    %474 = vmatpush2.xpose.msra.mxu0 0.0
    %475 = vmatprep.subr.mxu0 0.0
    %476 = vmatpush2.xpose.msra.mxu0 0.0
    %477 = vmatprep.subr.mxu0 0.0
    %478 = vmatpush2.xpose.msra.mxu0 0.0
    %479 = vmatprep.mubr.f32.mxu0 0.0
    %480 = vmatmul.mubr.f32.gmra.mxu0 %v338
    %v481 = vpop.f32.mrf.mxu0
    %v482 = vadd.f32 0.0, %v481
    %v483 = vpop.f32.mrf.mxu0
    %484 = vdwg.mxu0
    %485 = vmatprep.subr.mxu0 0.0
    %486 = vmatpush1.xpose.msra.mxu0 0.0
    %487 = vmatprep.subr.mxu0 0.0
    %488 = vmatpush1.xpose.msra.mxu0 0.0
    %489 = vmatprep.subr.mxu0 0.0
    %490 = vmatpush1.xpose.msra.mxu0 0.0
    %491 = vmatprep.subr.mxu0 0.0
    %492 = vmatpush1.xpose.msra.mxu0 0.0
    %493 = vmatprep.subr.mxu0 0.0
    %494 = vmatpush1.xpose.msra.mxu0 0.0
    %495 = vmatprep.subr.mxu0 0.0
    %496 = vmatpush1.xpose.msra.mxu0 0.0
    %497 = vmatprep.subr.mxu0 0.0
    %498 = vmatpush1.xpose.msra.mxu0 0.0
    %499 = vmatprep.subr.mxu0 0.0
    %500 = vmatpush1.xpose.msra.mxu0 0.0
    %501 = vmatprep.subr.mxu0 0.0
    %502 = vmatpush1.xpose.msra.mxu0 0.0
    %503 = vmatprep.subr.mxu0 0.0
    %504 = vmatpush1.xpose.msra.mxu0 0.0
    %505 = vmatprep.subr.mxu0 0.0
    %506 = vmatpush1.xpose.msra.mxu0 0.0
    %507 = vmatprep.subr.mxu0 0.0
    %508 = vmatpush1.xpose.msra.mxu0 0.0
    %509 = vmatprep.subr.mxu0 0.0
    %510 = vmatpush1.xpose.msra.mxu0 0.0
    %511 = vmatprep.subr.mxu0 0.0
    %512 = vmatpush1.xpose.msra.mxu0 0.0
    %513 = vmatprep.subr.mxu0 0.0
    %514 = vmatpush1.xpose.msra.mxu0 0.0
    %515 = vmatprep.subr.mxu0 0.0
    %516 = vmatpush1.xpose.msra.mxu0 %v303
    %517 = vmatprep.subr.mxu0 0.0
    %518 = vmatpush2.xpose.msra.mxu0 0.0
    %519 = vmatprep.subr.mxu0 0.0
    %520 = vmatpush2.xpose.msra.mxu0 0.0
    %521 = vmatprep.subr.mxu0 0.0
    %522 = vmatpush2.xpose.msra.mxu0 0.0
    %523 = vmatprep.subr.mxu0 0.0
    %524 = vmatpush2.xpose.msra.mxu0 0.0
    %525 = vmatprep.subr.mxu0 0.0
    %526 = vmatpush2.xpose.msra.mxu0 0.0
    %527 = vmatprep.subr.mxu0 0.0
    %528 = vmatpush2.xpose.msra.mxu0 0.0
    %529 = vmatprep.subr.mxu0 0.0
    %530 = vmatpush2.xpose.msra.mxu0 0.0
    %531 = vmatprep.subr.mxu0 0.0
    %532 = vmatpush2.xpose.msra.mxu0 0.0
    %533 = vmatprep.subr.mxu0 0.0
    %534 = vmatpush2.xpose.msra.mxu0 0.0
    %535 = vmatprep.subr.mxu0 0.0
    %536 = vmatpush2.xpose.msra.mxu0 0.0
    %537 = vmatprep.subr.mxu0 0.0
    %538 = vmatpush2.xpose.msra.mxu0 0.0
    %539 = vmatprep.subr.mxu0 0.0
    %540 = vmatpush2.xpose.msra.mxu0 0.0
    %541 = vmatprep.subr.mxu0 0.0
    %542 = vmatpush2.xpose.msra.mxu0 0.0
    %543 = vmatprep.subr.mxu0 0.0
    %544 = vmatpush2.xpose.msra.mxu0 0.0
    %545 = vmatprep.subr.mxu0 0.0
    %546 = vmatpush2.xpose.msra.mxu0 0.0
    %547 = vmatprep.subr.mxu0 0.0
    %548 = vmatpush2.xpose.msra.mxu0 0.0
    %549 = vmatprep.mubr.f32.mxu0 0.0
    %550 = vmatmul.mubr.f32.gmra.mxu0 %v339
    %v551 = vpop.f32.mrf.mxu0
    %v552 = vadd.f32 0.0, %v551
    %v553 = vpop.f32.mrf.mxu0
    %554 = vdwg.mxu0
    %555 = vmatprep.subr.mxu0 0.0
    %556 = vmatpush1.xpose.msra.mxu0 0.0
    %557 = vmatprep.subr.mxu0 0.0
    %558 = vmatpush1.xpose.msra.mxu0 0.0
    %559 = vmatprep.subr.mxu0 0.0
    %560 = vmatpush1.xpose.msra.mxu0 0.0
    %561 = vmatprep.subr.mxu0 0.0
    %562 = vmatpush1.xpose.msra.mxu0 0.0
    %563 = vmatprep.subr.mxu0 0.0
    %564 = vmatpush1.xpose.msra.mxu0 0.0
    %565 = vmatprep.subr.mxu0 0.0
    %566 = vmatpush1.xpose.msra.mxu0 0.0
    %567 = vmatprep.subr.mxu0 0.0
    %568 = vmatpush1.xpose.msra.mxu0 0.0
    %569 = vmatprep.subr.mxu0 0.0
    %570 = vmatpush1.xpose.msra.mxu0 0.0
    %571 = vmatprep.subr.mxu0 0.0
    %572 = vmatpush1.xpose.msra.mxu0 0.0
    %573 = vmatprep.subr.mxu0 0.0
    %574 = vmatpush1.xpose.msra.mxu0 0.0
    %575 = vmatprep.subr.mxu0 0.0
    %576 = vmatpush1.xpose.msra.mxu0 0.0
    %577 = vmatprep.subr.mxu0 0.0
    %578 = vmatpush1.xpose.msra.mxu0 0.0
    %579 = vmatprep.subr.mxu0 0.0
    %580 = vmatpush1.xpose.msra.mxu0 0.0
    %581 = vmatprep.subr.mxu0 0.0
    %582 = vmatpush1.xpose.msra.mxu0 0.0
    %583 = vmatprep.subr.mxu0 0.0
    %584 = vmatpush1.xpose.msra.mxu0 0.0
    %585 = vmatprep.subr.mxu0 0.0
    %586 = vmatpush1.xpose.msra.mxu0 %v309
    %587 = vmatprep.subr.mxu0 0.0
    %588 = vmatpush2.xpose.msra.mxu0 0.0
    %589 = vmatprep.subr.mxu0 0.0
    %590 = vmatpush2.xpose.msra.mxu0 0.0
    %591 = vmatprep.subr.mxu0 0.0
    %592 = vmatpush2.xpose.msra.mxu0 0.0
    %593 = vmatprep.subr.mxu0 0.0
    %594 = vmatpush2.xpose.msra.mxu0 0.0
    %595 = vmatprep.subr.mxu0 0.0
    %596 = vmatpush2.xpose.msra.mxu0 0.0
    %597 = vmatprep.subr.mxu0 0.0
    %598 = vmatpush2.xpose.msra.mxu0 0.0
    %599 = vmatprep.subr.mxu0 0.0
    %600 = vmatpush2.xpose.msra.mxu0 0.0
    %601 = vmatprep.subr.mxu0 0.0
    %602 = vmatpush2.xpose.msra.mxu0 0.0
    %603 = vmatprep.subr.mxu0 0.0
    %604 = vmatpush2.xpose.msra.mxu0 0.0
    %605 = vmatprep.subr.mxu0 0.0
    %606 = vmatpush2.xpose.msra.mxu0 0.0
    %607 = vmatprep.subr.mxu0 0.0
    %608 = vmatpush2.xpose.msra.mxu0 0.0
    %609 = vmatprep.subr.mxu0 0.0
    %610 = vmatpush2.xpose.msra.mxu0 0.0
    %611 = vmatprep.subr.mxu0 0.0
    %612 = vmatpush2.xpose.msra.mxu0 0.0
    %613 = vmatprep.subr.mxu0 0.0
    %614 = vmatpush2.xpose.msra.mxu0 0.0
    %615 = vmatprep.subr.mxu0 0.0
    %616 = vmatpush2.xpose.msra.mxu0 0.0
    %617 = vmatprep.subr.mxu0 0.0
    %618 = vmatpush2.xpose.msra.mxu0 0.0
    %619 = vmatprep.mubr.f32.mxu0 0.0
    %620 = vmatmul.mubr.f32.gmra.mxu0 %v340
    %v621 = vpop.f32.mrf.mxu0
    %v622 = vadd.f32 0.0, %v621
    %v623 = vpop.f32.mrf.mxu0
    %624 = vdwg.mxu0
    %625 = vmatprep.subr.mxu0 0.0
    %626 = vmatpush1.xpose.msra.mxu0 0.0
    %627 = vmatprep.subr.mxu0 0.0
    %628 = vmatpush1.xpose.msra.mxu0 0.0
    %629 = vmatprep.subr.mxu0 0.0
    %630 = vmatpush1.xpose.msra.mxu0 0.0
    %631 = vmatprep.subr.mxu0 0.0
    %632 = vmatpush1.xpose.msra.mxu0 0.0
    %633 = vmatprep.subr.mxu0 0.0
    %634 = vmatpush1.xpose.msra.mxu0 0.0
    %635 = vmatprep.subr.mxu0 0.0
    %636 = vmatpush1.xpose.msra.mxu0 0.0
    %637 = vmatprep.subr.mxu0 0.0
    %638 = vmatpush1.xpose.msra.mxu0 0.0
    %639 = vmatprep.subr.mxu0 0.0
    %640 = vmatpush1.xpose.msra.mxu0 0.0
    %641 = vmatprep.subr.mxu0 0.0
    %642 = vmatpush1.xpose.msra.mxu0 0.0
    %643 = vmatprep.subr.mxu0 0.0
    %644 = vmatpush1.xpose.msra.mxu0 0.0
    %645 = vmatprep.subr.mxu0 0.0
    %646 = vmatpush1.xpose.msra.mxu0 0.0
    %647 = vmatprep.subr.mxu0 0.0
    %648 = vmatpush1.xpose.msra.mxu0 0.0
    %649 = vmatprep.subr.mxu0 0.0
    %650 = vmatpush1.xpose.msra.mxu0 0.0
    %651 = vmatprep.subr.mxu0 0.0
    %652 = vmatpush1.xpose.msra.mxu0 0.0
    %653 = vmatprep.subr.mxu0 0.0
    %654 = vmatpush1.xpose.msra.mxu0 0.0
    %655 = vmatprep.subr.mxu0 0.0
    %656 = vmatpush1.xpose.msra.mxu0 %v315
    %657 = vmatprep.subr.mxu0 0.0
    %658 = vmatpush2.xpose.msra.mxu0 0.0
    %659 = vmatprep.subr.mxu0 0.0
    %660 = vmatpush2.xpose.msra.mxu0 0.0
    %661 = vmatprep.subr.mxu0 0.0
    %662 = vmatpush2.xpose.msra.mxu0 0.0
    %663 = vmatprep.subr.mxu0 0.0
    %664 = vmatpush2.xpose.msra.mxu0 0.0
    %665 = vmatprep.subr.mxu0 0.0
    %666 = vmatpush2.xpose.msra.mxu0 0.0
    %667 = vmatprep.subr.mxu0 0.0
    %668 = vmatpush2.xpose.msra.mxu0 0.0
    %669 = vmatprep.subr.mxu0 0.0
    %670 = vmatpush2.xpose.msra.mxu0 0.0
    %671 = vmatprep.subr.mxu0 0.0
    %672 = vmatpush2.xpose.msra.mxu0 0.0
    %673 = vmatprep.subr.mxu0 0.0
    %674 = vmatpush2.xpose.msra.mxu0 0.0
    %675 = vmatprep.subr.mxu0 0.0
    %676 = vmatpush2.xpose.msra.mxu0 0.0
    %677 = vmatprep.subr.mxu0 0.0
    %678 = vmatpush2.xpose.msra.mxu0 0.0
    %679 = vmatprep.subr.mxu0 0.0
    %680 = vmatpush2.xpose.msra.mxu0 0.0
    %681 = vmatprep.subr.mxu0 0.0
    %682 = vmatpush2.xpose.msra.mxu0 0.0
    %683 = vmatprep.subr.mxu0 0.0
    %684 = vmatpush2.xpose.msra.mxu0 0.0
    %685 = vmatprep.subr.mxu0 0.0
    %686 = vmatpush2.xpose.msra.mxu0 0.0
    %687 = vmatprep.subr.mxu0 0.0
    %688 = vmatpush2.xpose.msra.mxu0 0.0
    %689 = vmatprep.mubr.f32.mxu0 0.0
    %690 = vmatmul.mubr.f32.gmra.mxu0 %v341
    %v691 = vpop.f32.mrf.mxu0
    %v692 = vadd.f32 0.0, %v691
    %v693 = vpop.f32.mrf.mxu0
    %694 = vdwg.mxu0
    %695 = vmatprep.subr.mxu0 0.0
    %696 = vmatpush1.xpose.msra.mxu0 0.0
    %697 = vmatprep.subr.mxu0 0.0
    %698 = vmatpush1.xpose.msra.mxu0 0.0
    %699 = vmatprep.subr.mxu0 0.0
    %700 = vmatpush1.xpose.msra.mxu0 0.0
    %701 = vmatprep.subr.mxu0 0.0
    %702 = vmatpush1.xpose.msra.mxu0 0.0
    %703 = vmatprep.subr.mxu0 0.0
    %704 = vmatpush1.xpose.msra.mxu0 0.0
    %705 = vmatprep.subr.mxu0 0.0
    %706 = vmatpush1.xpose.msra.mxu0 0.0
    %707 = vmatprep.subr.mxu0 0.0
    %708 = vmatpush1.xpose.msra.mxu0 0.0
    %709 = vmatprep.subr.mxu0 0.0
    %710 = vmatpush1.xpose.msra.mxu0 0.0
    %711 = vmatprep.subr.mxu0 0.0
    %712 = vmatpush1.xpose.msra.mxu0 0.0
    %713 = vmatprep.subr.mxu0 0.0
    %714 = vmatpush1.xpose.msra.mxu0 0.0
    %715 = vmatprep.subr.mxu0 0.0
    %716 = vmatpush1.xpose.msra.mxu0 0.0
    %717 = vmatprep.subr.mxu0 0.0
    %718 = vmatpush1.xpose.msra.mxu0 0.0
    %719 = vmatprep.subr.mxu0 0.0
    %720 = vmatpush1.xpose.msra.mxu0 0.0
    %721 = vmatprep.subr.mxu0 0.0
    %722 = vmatpush1.xpose.msra.mxu0 0.0
    %723 = vmatprep.subr.mxu0 0.0
    %724 = vmatpush1.xpose.msra.mxu0 0.0
    %725 = vmatprep.subr.mxu0 0.0
    %726 = vmatpush1.xpose.msra.mxu0 %v321
    %727 = vmatprep.subr.mxu0 0.0
    %728 = vmatpush2.xpose.msra.mxu0 0.0
    %729 = vmatprep.subr.mxu0 0.0
    %730 = vmatpush2.xpose.msra.mxu0 0.0
    %731 = vmatprep.subr.mxu0 0.0
    %732 = vmatpush2.xpose.msra.mxu0 0.0
    %733 = vmatprep.subr.mxu0 0.0
    %734 = vmatpush2.xpose.msra.mxu0 0.0
    %735 = vmatprep.subr.mxu0 0.0
    %736 = vmatpush2.xpose.msra.mxu0 0.0
    %737 = vmatprep.subr.mxu0 0.0
    %738 = vmatpush2.xpose.msra.mxu0 0.0
    %739 = vmatprep.subr.mxu0 0.0
    %740 = vmatpush2.xpose.msra.mxu0 0.0
    %741 = vmatprep.subr.mxu0 0.0
    %742 = vmatpush2.xpose.msra.mxu0 0.0
    %743 = vmatprep.subr.mxu0 0.0
    %744 = vmatpush2.xpose.msra.mxu0 0.0
    %745 = vmatprep.subr.mxu0 0.0
    %746 = vmatpush2.xpose.msra.mxu0 0.0
    %747 = vmatprep.subr.mxu0 0.0
    %748 = vmatpush2.xpose.msra.mxu0 0.0
    %749 = vmatprep.subr.mxu0 0.0
    %750 = vmatpush2.xpose.msra.mxu0 0.0
    %751 = vmatprep.subr.mxu0 0.0
    %752 = vmatpush2.xpose.msra.mxu0 0.0
    %753 = vmatprep.subr.mxu0 0.0
    %754 = vmatpush2.xpose.msra.mxu0 0.0
    %755 = vmatprep.subr.mxu0 0.0
    %756 = vmatpush2.xpose.msra.mxu0 0.0
    %757 = vmatprep.subr.mxu0 0.0
    %758 = vmatpush2.xpose.msra.mxu0 0.0
    %759 = vmatprep.mubr.f32.mxu0 0.0
    %760 = vmatmul.mubr.f32.gmra.mxu0 %v342
    %v761 = vpop.f32.mrf.mxu0
    %v762 = vadd.f32 0.0, %v761
    %v763 = vpop.f32.mrf.mxu0
    %764 = vdwg.mxu0
    %765 = vmatprep.subr.mxu0 0.0
    %766 = vmatpush1.xpose.msra.mxu0 0.0
    %767 = vmatprep.subr.mxu0 0.0
    %768 = vmatpush1.xpose.msra.mxu0 0.0
    %769 = vmatprep.subr.mxu0 0.0
    %770 = vmatpush1.xpose.msra.mxu0 0.0
    %771 = vmatprep.subr.mxu0 0.0
    %772 = vmatpush1.xpose.msra.mxu0 0.0
    %773 = vmatprep.subr.mxu0 0.0
    %774 = vmatpush1.xpose.msra.mxu0 0.0
    %775 = vmatprep.subr.mxu0 0.0
    %776 = vmatpush1.xpose.msra.mxu0 0.0
    %777 = vmatprep.subr.mxu0 0.0
    %778 = vmatpush1.xpose.msra.mxu0 0.0
    %779 = vmatprep.subr.mxu0 0.0
    %780 = vmatpush1.xpose.msra.mxu0 0.0
    %781 = vmatprep.subr.mxu0 0.0
    %782 = vmatpush1.xpose.msra.mxu0 0.0
    %783 = vmatprep.subr.mxu0 0.0
    %784 = vmatpush1.xpose.msra.mxu0 0.0
    %785 = vmatprep.subr.mxu0 0.0
    %786 = vmatpush1.xpose.msra.mxu0 0.0
    %787 = vmatprep.subr.mxu0 0.0
    %788 = vmatpush1.xpose.msra.mxu0 0.0
    %789 = vmatprep.subr.mxu0 0.0
    %790 = vmatpush1.xpose.msra.mxu0 0.0
    %791 = vmatprep.subr.mxu0 0.0
    %792 = vmatpush1.xpose.msra.mxu0 0.0
    %793 = vmatprep.subr.mxu0 0.0
    %794 = vmatpush1.xpose.msra.mxu0 0.0
    %795 = vmatprep.subr.mxu0 0.0
    %796 = vmatpush1.xpose.msra.mxu0 %v327
    %797 = vmatprep.subr.mxu0 0.0
    %798 = vmatpush2.xpose.msra.mxu0 0.0
    %799 = vmatprep.subr.mxu0 0.0
    %800 = vmatpush2.xpose.msra.mxu0 0.0
    %801 = vmatprep.subr.mxu0 0.0
    %802 = vmatpush2.xpose.msra.mxu0 0.0
    %803 = vmatprep.subr.mxu0 0.0
    %804 = vmatpush2.xpose.msra.mxu0 0.0
    %805 = vmatprep.subr.mxu0 0.0
    %806 = vmatpush2.xpose.msra.mxu0 0.0
    %807 = vmatprep.subr.mxu0 0.0
    %808 = vmatpush2.xpose.msra.mxu0 0.0
    %809 = vmatprep.subr.mxu0 0.0
    %810 = vmatpush2.xpose.msra.mxu0 0.0
    %811 = vmatprep.subr.mxu0 0.0
    %812 = vmatpush2.xpose.msra.mxu0 0.0
    %813 = vmatprep.subr.mxu0 0.0
    %814 = vmatpush2.xpose.msra.mxu0 0.0
    %815 = vmatprep.subr.mxu0 0.0
    %816 = vmatpush2.xpose.msra.mxu0 0.0
    %817 = vmatprep.subr.mxu0 0.0
    %818 = vmatpush2.xpose.msra.mxu0 0.0
    %819 = vmatprep.subr.mxu0 0.0
    %820 = vmatpush2.xpose.msra.mxu0 0.0
    %821 = vmatprep.subr.mxu0 0.0
    %822 = vmatpush2.xpose.msra.mxu0 0.0
    %823 = vmatprep.subr.mxu0 0.0
    %824 = vmatpush2.xpose.msra.mxu0 0.0
    %825 = vmatprep.subr.mxu0 0.0
    %826 = vmatpush2.xpose.msra.mxu0 0.0
    %827 = vmatprep.subr.mxu0 0.0
    %828 = vmatpush2.xpose.msra.mxu0 0.0
    %829 = vmatprep.mubr.f32.mxu0 0.0
    %830 = vmatmul.mubr.f32.gmra.mxu0 %v343
    %v831 = vpop.f32.mrf.mxu0
    %v832 = vadd.f32 0.0, %v831
    %v833 = vpop.f32.mrf.mxu0
    %834 = vdwg.mxu0
    %835 = vmatprep.subr.mxu0 0.0
    %836 = vmatpush1.xpose.msra.mxu0 0.0
    %837 = vmatprep.subr.mxu0 0.0
    %838 = vmatpush1.xpose.msra.mxu0 0.0
    %839 = vmatprep.subr.mxu0 0.0
    %840 = vmatpush1.xpose.msra.mxu0 0.0
    %841 = vmatprep.subr.mxu0 0.0
    %842 = vmatpush1.xpose.msra.mxu0 0.0
    %843 = vmatprep.subr.mxu0 0.0
    %844 = vmatpush1.xpose.msra.mxu0 0.0
    %845 = vmatprep.subr.mxu0 0.0
    %846 = vmatpush1.xpose.msra.mxu0 0.0
    %847 = vmatprep.subr.mxu0 0.0
    %848 = vmatpush1.xpose.msra.mxu0 0.0
    %849 = vmatprep.subr.mxu0 0.0
    %850 = vmatpush1.xpose.msra.mxu0 0.0
    %851 = vmatprep.subr.mxu0 0.0
    %852 = vmatpush1.xpose.msra.mxu0 0.0
    %853 = vmatprep.subr.mxu0 0.0
    %854 = vmatpush1.xpose.msra.mxu0 0.0
    %855 = vmatprep.subr.mxu0 0.0
    %856 = vmatpush1.xpose.msra.mxu0 0.0
    %857 = vmatprep.subr.mxu0 0.0
    %858 = vmatpush1.xpose.msra.mxu0 0.0
    %859 = vmatprep.subr.mxu0 0.0
    %860 = vmatpush1.xpose.msra.mxu0 0.0
    %861 = vmatprep.subr.mxu0 0.0
    %862 = vmatpush1.xpose.msra.mxu0 0.0
    %863 = vmatprep.subr.mxu0 0.0
    %864 = vmatpush1.xpose.msra.mxu0 0.0
    %865 = vmatprep.subr.mxu0 0.0
    %866 = vmatpush1.xpose.msra.mxu0 %v333
    %867 = vmatprep.subr.mxu0 0.0
    %868 = vmatpush2.xpose.msra.mxu0 0.0
    %869 = vmatprep.subr.mxu0 0.0
    %870 = vmatpush2.xpose.msra.mxu0 0.0
    %871 = vmatprep.subr.mxu0 0.0
    %872 = vmatpush2.xpose.msra.mxu0 0.0
    %873 = vmatprep.subr.mxu0 0.0
    %874 = vmatpush2.xpose.msra.mxu0 0.0
    %875 = vmatprep.subr.mxu0 0.0
    %876 = vmatpush2.xpose.msra.mxu0 0.0
    %877 = vmatprep.subr.mxu0 0.0
    %878 = vmatpush2.xpose.msra.mxu0 0.0
    %879 = vmatprep.subr.mxu0 0.0
    %880 = vmatpush2.xpose.msra.mxu0 0.0
    %881 = vmatprep.subr.mxu0 0.0
    %882 = vmatpush2.xpose.msra.mxu0 0.0
    %883 = vmatprep.subr.mxu0 0.0
    %884 = vmatpush2.xpose.msra.mxu0 0.0
    %885 = vmatprep.subr.mxu0 0.0
    %886 = vmatpush2.xpose.msra.mxu0 0.0
    %887 = vmatprep.subr.mxu0 0.0
    %888 = vmatpush2.xpose.msra.mxu0 0.0
    %889 = vmatprep.subr.mxu0 0.0
    %890 = vmatpush2.xpose.msra.mxu0 0.0
    %891 = vmatprep.subr.mxu0 0.0
    %892 = vmatpush2.xpose.msra.mxu0 0.0
    %893 = vmatprep.subr.mxu0 0.0
    %894 = vmatpush2.xpose.msra.mxu0 0.0
    %895 = vmatprep.subr.mxu0 0.0
    %896 = vmatpush2.xpose.msra.mxu0 0.0
    %897 = vmatprep.subr.mxu0 0.0
    %898 = vmatpush2.xpose.msra.mxu0 0.0
    %899 = vmatprep.mubr.f32.mxu0 0.0
    %900 = vmatmul.mubr.f32.gmra.mxu0 %v344
    %v901 = vpop.f32.mrf.mxu0
    %v902 = vadd.f32 0.0, %v901
    %v903 = vpop.f32.mrf.mxu0
    %904 = vdwg.mxu0
    %v905 = vld [vmem:[#allocation3] sm:$0xff]
    %v906 = vld [vmem:[#allocation3 + $0x8] sm:$0xff]
    %v907 = vld [vmem:[#allocation3 + $0x10] sm:$0xff]
    %v908 = vld [vmem:[#allocation3 + $0x18] sm:$0xff]
    %v909 = vld [vmem:[#allocation3 + $0x20] sm:$0xff]
    %v910 = vld [vmem:[#allocation3 + $0x28] sm:$0xff]
    %v911 = vld [vmem:[#allocation3 + $0x30] sm:$0xff]
    %v912 = vld [vmem:[#allocation3 + $0x38] sm:$0xff]
    %vm913 = vcmask 64512
    %v914 = vsel %vm913, %v412, -inf
    %915 = vmax.xlane.f32.xlu0 %v914
    %v916 = vpop.xlane.xlu0 %915
    %v917 = vsel %vm913, %v482, -inf
    %918 = vmax.xlane.f32.xlu0 %v917
    %v919 = vpop.xlane.xlu0 %918
    %v920 = vsel %vm913, %v552, -inf
    %921 = vmax.xlane.f32.xlu0 %v920
    %v922 = vpop.xlane.xlu0 %921
    %v923 = vsel %vm913, %v622, -inf
    %924 = vmax.xlane.f32.xlu0 %v923
    %v925 = vpop.xlane.xlu0 %924
    %v926 = vsel %vm913, %v692, -inf
    %927 = vmax.xlane.f32.xlu0 %v926
    %v928 = vpop.xlane.xlu0 %927
    %v929 = vsel %vm913, %v762, -inf
    %930 = vmax.xlane.f32.xlu0 %v929
    %v931 = vpop.xlane.xlu0 %930
    %v932 = vsel %vm913, %v832, -inf
    %933 = vmax.xlane.f32.xlu0 %v932
    %v934 = vpop.xlane.xlu0 %933
    %v935 = vsel %vm913, %v902, -inf
    %936 = vmax.xlane.f32.xlu0 %v935
    %v937 = vpop.xlane.xlu0 %936
    %v938 = vmax.f32 %v905, %v916
    %v939 = vmax.f32 %v906, %v919
    %v940 = vmax.f32 %v907, %v922
    %v941 = vmax.f32 %v908, %v925
    %v942 = vmax.f32 %v909, %v928
    %v943 = vmax.f32 %v910, %v931
    %v944 = vmax.f32 %v911, %v934
    %v945 = vmax.f32 %v912, %v937
    %v946 = vsub.f32 %v905, %v938
    %v947 = vsub.f32 %v906, %v939
    %v948 = vsub.f32 %v907, %v940
    %v949 = vsub.f32 %v908, %v941
    %v950 = vsub.f32 %v909, %v942
    %v951 = vsub.f32 %v910, %v943
    %v952 = vsub.f32 %v911, %v944
    %v953 = vsub.f32 %v912, %v945
    %v954 = vmul.f32 %v946, 1.442695
    %v955 = vpow.pop %v954
    %v956 = vmul.f32 %v947, 1.442695
    %v957 = vpow.pop %v956
    %v958 = vmul.f32 %v948, 1.442695
    %v959 = vpow.pop %v958
    %v960 = vmul.f32 %v949, 1.442695
    %v961 = vpow.pop %v960
    %v962 = vmul.f32 %v950, 1.442695
    %v963 = vpow.pop %v962
    %v964 = vmul.f32 %v951, 1.442695
    %v965 = vpow.pop %v964
    %v966 = vmul.f32 %v952, 1.442695
    %v967 = vpow.pop %v966
    %v968 = vmul.f32 %v953, 1.442695
    %v969 = vpow.pop %v968
    %971 = vset.pattern.permute.xlu0 0
    %972 = vperm.xlu0 %971, %v938
    %v973 = vpop.permute.xlu0 %972
    %976 = vset.pattern.permute.xlu0 0
    %977 = vperm.xlu0 %976, %v939
    %v978 = vpop.permute.xlu0 %977
    %981 = vset.pattern.permute.xlu0 0
    %982 = vperm.xlu0 %981, %v940
    %v983 = vpop.permute.xlu0 %982
    %986 = vset.pattern.permute.xlu0 0
    %987 = vperm.xlu0 %986, %v941
    %v988 = vpop.permute.xlu0 %987
    %991 = vset.pattern.permute.xlu0 0
    %992 = vperm.xlu0 %991, %v942
    %v993 = vpop.permute.xlu0 %992
    %996 = vset.pattern.permute.xlu0 0
    %997 = vperm.xlu0 %996, %v943
    %v998 = vpop.permute.xlu0 %997
    %1001 = vset.pattern.permute.xlu0 0
    %1002 = vperm.xlu0 %1001, %v944
    %v1003 = vpop.permute.xlu0 %1002
    %1006 = vset.pattern.permute.xlu0 0
    %1007 = vperm.xlu0 %1006, %v945
    %v1008 = vpop.permute.xlu0 %1007
    %v1010 = vsub.f32 %v412, %v973
    %v1011 = vsub.f32 %v482, %v978
    %v1012 = vsub.f32 %v552, %v983
    %v1013 = vsub.f32 %v622, %v988
    %v1014 = vsub.f32 %v692, %v993
    %v1015 = vsub.f32 %v762, %v998
    %v1016 = vsub.f32 %v832, %v1003
    %v1017 = vsub.f32 %v902, %v1008
    %v1018 = vmul.f32 %v1010, 1.442695
    %v1019 = vpow.pop %v1018
    %v1020 = vmul.f32 %v1011, 1.442695
    %v1021 = vpow.pop %v1020
    %v1022 = vmul.f32 %v1012, 1.442695
    %v1023 = vpow.pop %v1022
    %v1024 = vmul.f32 %v1013, 1.442695
    %v1025 = vpow.pop %v1024
    %v1026 = vmul.f32 %v1014, 1.442695
    %v1027 = vpow.pop %v1026
    %v1028 = vmul.f32 %v1015, 1.442695
    %v1029 = vpow.pop %v1028
    %v1030 = vmul.f32 %v1016, 1.442695
    %v1031 = vpow.pop %v1030
    %v1032 = vmul.f32 %v1017, 1.442695
    %v1033 = vpow.pop %v1032
    %v1034 = vld [vmem:[#allocation4] sm:$0xff]
    %v1035 = vld [vmem:[#allocation4 + $0x8] sm:$0xff]
    %v1036 = vld [vmem:[#allocation4 + $0x10] sm:$0xff]
    %v1037 = vld [vmem:[#allocation4 + $0x18] sm:$0xff]
    %v1038 = vld [vmem:[#allocation4 + $0x20] sm:$0xff]
    %v1039 = vld [vmem:[#allocation4 + $0x28] sm:$0xff]
    %v1040 = vld [vmem:[#allocation4 + $0x30] sm:$0xff]
    %v1041 = vld [vmem:[#allocation4 + $0x38] sm:$0xff]
    %v1042 = vmul.f32 %v955, %v1034
    %v1043 = vmul.f32 %v957, %v1035
    %v1044 = vmul.f32 %v959, %v1036
    %v1045 = vmul.f32 %v961, %v1037
    %v1046 = vmul.f32 %v963, %v1038
    %v1047 = vmul.f32 %v965, %v1039
    %v1048 = vmul.f32 %v967, %v1040
    %v1049 = vmul.f32 %v969, %v1041
    %v1050 = vsel %vm913, %v1019, 0.0
    %1051 = vadd.xlane.f32.xlu0 %v1050
    %v1052 = vpop.xlane.xlu0 %1051
    %v1053 = vsel %vm913, %v1021, 0.0
    %1054 = vadd.xlane.f32.xlu0 %v1053
    %v1055 = vpop.xlane.xlu0 %1054
    %v1056 = vsel %vm913, %v1023, 0.0
    %1057 = vadd.xlane.f32.xlu0 %v1056
    %v1058 = vpop.xlane.xlu0 %1057
    %v1059 = vsel %vm913, %v1025, 0.0
    %1060 = vadd.xlane.f32.xlu0 %v1059
    %v1061 = vpop.xlane.xlu0 %1060
    %v1062 = vsel %vm913, %v1027, 0.0
    %1063 = vadd.xlane.f32.xlu0 %v1062
    %v1064 = vpop.xlane.xlu0 %1063
    %v1065 = vsel %vm913, %v1029, 0.0
    %1066 = vadd.xlane.f32.xlu0 %v1065
    %v1067 = vpop.xlane.xlu0 %1066
    %v1068 = vsel %vm913, %v1031, 0.0
    %1069 = vadd.xlane.f32.xlu0 %v1068
    %v1070 = vpop.xlane.xlu0 %1069
    %v1071 = vsel %vm913, %v1033, 0.0
    %1072 = vadd.xlane.f32.xlu0 %v1071
    %v1073 = vpop.xlane.xlu0 %1072
    %v1074 = vadd.f32 %v1042, %v1052
    %v1075 = vadd.f32 %v1043, %v1055
    %v1076 = vadd.f32 %v1044, %v1058
    %v1077 = vadd.f32 %v1045, %v1061
    %v1078 = vadd.f32 %v1046, %v1064
    %v1079 = vadd.f32 %v1047, %v1067
    %v1080 = vadd.f32 %v1048, %v1070
    %v1081 = vadd.f32 %v1049, %v1073
    %vm1082 = vcmask 7168
    %1083 = vst.msk [vmem:[#allocation4] sm:$0xff] %vm1082, %v1074
    %1084 = vst.msk [vmem:[#allocation4 + $0x8] sm:$0xff] %vm1082, %v1075
    %1085 = vst.msk [vmem:[#allocation4 + $0x10] sm:$0xff] %vm1082, %v1076
    %1086 = vst.msk [vmem:[#allocation4 + $0x18] sm:$0xff] %vm1082, %v1077
    %1087 = vst.msk [vmem:[#allocation4 + $0x20] sm:$0xff] %vm1082, %v1078
    %1088 = vst.msk [vmem:[#allocation4 + $0x28] sm:$0xff] %vm1082, %v1079
    %1089 = vst.msk [vmem:[#allocation4 + $0x30] sm:$0xff] %vm1082, %v1080
    %1090 = vst.msk [vmem:[#allocation4 + $0x38] sm:$0xff] %vm1082, %v1081
    %v1091 = vld [vmem:[#allocation5] sm:$0xff]
    %v1092 = vld [vmem:[#allocation5 + $0x8] sm:$0xff]
    %v1093 = vld [vmem:[#allocation5 + $0x10] sm:$0xff]
    %v1094 = vld [vmem:[#allocation5 + $0x18] sm:$0xff]
    %v1095 = vld [vmem:[#allocation5 + $0x20] sm:$0xff]
    %v1096 = vld [vmem:[#allocation5 + $0x28] sm:$0xff]
    %v1097 = vld [vmem:[#allocation5 + $0x30] sm:$0xff]
    %v1098 = vld [vmem:[#allocation5 + $0x38] sm:$0xff]
    %1100 = vset.pattern.permute.xlu0 0
    %1101 = vperm.xlu0 %1100, %v955
    %v1102 = vpop.permute.xlu0 %1101
    %1105 = vset.pattern.permute.xlu0 0
    %1106 = vperm.xlu0 %1105, %v957
    %v1107 = vpop.permute.xlu0 %1106
    %1110 = vset.pattern.permute.xlu0 0
    %1111 = vperm.xlu0 %1110, %v959
    %v1112 = vpop.permute.xlu0 %1111
    %1115 = vset.pattern.permute.xlu0 0
    %1116 = vperm.xlu0 %1115, %v961
    %v1117 = vpop.permute.xlu0 %1116
    %1120 = vset.pattern.permute.xlu0 0
    %1121 = vperm.xlu0 %1120, %v963
    %v1122 = vpop.permute.xlu0 %1121
    %1125 = vset.pattern.permute.xlu0 0
    %1126 = vperm.xlu0 %1125, %v965
    %v1127 = vpop.permute.xlu0 %1126
    %1130 = vset.pattern.permute.xlu0 0
    %1131 = vperm.xlu0 %1130, %v967
    %v1132 = vpop.permute.xlu0 %1131
    %1135 = vset.pattern.permute.xlu0 0
    %1136 = vperm.xlu0 %1135, %v969
    %v1137 = vpop.permute.xlu0 %1136
    %v1139 = vmul.f32 %v1102, %v1091
    %v1140 = vmul.f32 %v1107, %v1092
    %v1141 = vmul.f32 %v1112, %v1093
    %v1142 = vmul.f32 %v1117, %v1094
    %v1143 = vmul.f32 %v1122, %v1095
    %v1144 = vmul.f32 %v1127, %v1096
    %v1145 = vmul.f32 %v1132, %v1097
    %v1146 = vmul.f32 %v1137, %v1098
    %v1148 = vsel %vm913, %v1019, 0
    %1150 = vmatprep.subr.mxu0 0.0
    %1151 = vmatpush1.msra.mxu0 0.0
    %1152 = vmatprep.subr.mxu0 0.0
    %1153 = vmatpush1.msra.mxu0 0.0
    %1154 = vmatprep.subr.mxu0 0.0
    %1155 = vmatpush1.msra.mxu0 0.0
    %1156 = vmatprep.subr.mxu0 0.0
    %1157 = vmatpush1.msra.mxu0 0.0
    %1158 = vmatprep.subr.mxu0 0.0
    %1159 = vmatpush1.msra.mxu0 0.0
    %1160 = vmatprep.subr.mxu0 0.0
    %1161 = vmatpush1.msra.mxu0 0.0
    %1162 = vmatprep.subr.mxu0 0.0
    %1163 = vmatpush1.msra.mxu0 0.0
    %1164 = vmatprep.subr.mxu0 0.0
    %1165 = vmatpush1.msra.mxu0 0.0
    %1166 = vmatprep.subr.mxu0 0.0
    %1167 = vmatpush1.msra.mxu0 0.0
    %1168 = vmatprep.subr.mxu0 0.0
    %1169 = vmatpush1.msra.mxu0 0.0
    %1170 = vmatprep.subr.mxu0 0.0
    %1171 = vmatpush1.msra.mxu0 0.0
    %1172 = vmatprep.subr.mxu0 0.0
    %1173 = vmatpush1.msra.mxu0 0.0
    %1174 = vmatprep.subr.mxu0 0.0
    %1175 = vmatpush1.msra.mxu0 0.0
    %1176 = vmatprep.subr.mxu0 0.0
    %1177 = vmatpush1.msra.mxu0 0.0
    %1178 = vmatprep.subr.mxu0 0.0
    %1179 = vmatpush1.msra.mxu0 0.0
    %1180 = vmatprep.subr.mxu0 0.0
    %1181 = vmatpush1.msra.mxu0 %v293
    %1182 = vmatprep.subr.mxu0 0.0
    %1183 = vmatpush2.msra.mxu0 0.0
    %1184 = vmatprep.subr.mxu0 0.0
    %1185 = vmatpush2.msra.mxu0 0.0
    %1186 = vmatprep.subr.mxu0 0.0
    %1187 = vmatpush2.msra.mxu0 0.0
    %1188 = vmatprep.subr.mxu0 0.0
    %1189 = vmatpush2.msra.mxu0 0.0
    %1190 = vmatprep.subr.mxu0 0.0
    %1191 = vmatpush2.msra.mxu0 0.0
    %1192 = vmatprep.subr.mxu0 0.0
    %1193 = vmatpush2.msra.mxu0 0.0
    %1194 = vmatprep.subr.mxu0 0.0
    %1195 = vmatpush2.msra.mxu0 0.0
    %1196 = vmatprep.subr.mxu0 0.0
    %1197 = vmatpush2.msra.mxu0 0.0
    %1198 = vmatprep.subr.mxu0 0.0
    %1199 = vmatpush2.msra.mxu0 0.0
    %1200 = vmatprep.subr.mxu0 0.0
    %1201 = vmatpush2.msra.mxu0 0.0
    %1202 = vmatprep.subr.mxu0 0.0
    %1203 = vmatpush2.msra.mxu0 0.0
    %1204 = vmatprep.subr.mxu0 0.0
    %1205 = vmatpush2.msra.mxu0 0.0
    %1206 = vmatprep.subr.mxu0 0.0
    %1207 = vmatpush2.msra.mxu0 0.0
    %1208 = vmatprep.subr.mxu0 0.0
    %1209 = vmatpush2.msra.mxu0 0.0
    %1210 = vmatprep.subr.mxu0 0.0
    %1211 = vmatpush2.msra.mxu0 0.0
    %1212 = vmatprep.subr.mxu0 0.0
    %1213 = vmatpush2.msra.mxu0 0.0
    %1214 = vmatprep.mubr.f32.mxu0 0.0
    %1215 = vmatmul.mubr.f32.gmra.mxu0 %v1148
    %v1216 = vpop.f32.mrf.mxu0
    %v1217 = vadd.f32 0.0, %v1216
    %v1218 = vpop.f32.mrf.mxu0
    %1219 = vdwg.mxu0
    %v1221 = vsel %vm913, %v1021, 0
    %1223 = vmatprep.subr.mxu0 0.0
    %1224 = vmatpush1.msra.mxu0 0.0
    %1225 = vmatprep.subr.mxu0 0.0
    %1226 = vmatpush1.msra.mxu0 0.0
    %1227 = vmatprep.subr.mxu0 0.0
    %1228 = vmatpush1.msra.mxu0 0.0
    %1229 = vmatprep.subr.mxu0 0.0
    %1230 = vmatpush1.msra.mxu0 0.0
    %1231 = vmatprep.subr.mxu0 0.0
    %1232 = vmatpush1.msra.mxu0 0.0
    %1233 = vmatprep.subr.mxu0 0.0
    %1234 = vmatpush1.msra.mxu0 0.0
    %1235 = vmatprep.subr.mxu0 0.0
    %1236 = vmatpush1.msra.mxu0 0.0
    %1237 = vmatprep.subr.mxu0 0.0
    %1238 = vmatpush1.msra.mxu0 0.0
    %1239 = vmatprep.subr.mxu0 0.0
    %1240 = vmatpush1.msra.mxu0 0.0
    %1241 = vmatprep.subr.mxu0 0.0
    %1242 = vmatpush1.msra.mxu0 0.0
    %1243 = vmatprep.subr.mxu0 0.0
    %1244 = vmatpush1.msra.mxu0 0.0
    %1245 = vmatprep.subr.mxu0 0.0
    %1246 = vmatpush1.msra.mxu0 0.0
    %1247 = vmatprep.subr.mxu0 0.0
    %1248 = vmatpush1.msra.mxu0 0.0
    %1249 = vmatprep.subr.mxu0 0.0
    %1250 = vmatpush1.msra.mxu0 0.0
    %1251 = vmatprep.subr.mxu0 0.0
    %1252 = vmatpush1.msra.mxu0 0.0
    %1253 = vmatprep.subr.mxu0 0.0
    %1254 = vmatpush1.msra.mxu0 %v299
    %1255 = vmatprep.subr.mxu0 0.0
    %1256 = vmatpush2.msra.mxu0 0.0
    %1257 = vmatprep.subr.mxu0 0.0
    %1258 = vmatpush2.msra.mxu0 0.0
    %1259 = vmatprep.subr.mxu0 0.0
    %1260 = vmatpush2.msra.mxu0 0.0
    %1261 = vmatprep.subr.mxu0 0.0
    %1262 = vmatpush2.msra.mxu0 0.0
    %1263 = vmatprep.subr.mxu0 0.0
    %1264 = vmatpush2.msra.mxu0 0.0
    %1265 = vmatprep.subr.mxu0 0.0
    %1266 = vmatpush2.msra.mxu0 0.0
    %1267 = vmatprep.subr.mxu0 0.0
    %1268 = vmatpush2.msra.mxu0 0.0
    %1269 = vmatprep.subr.mxu0 0.0
    %1270 = vmatpush2.msra.mxu0 0.0
    %1271 = vmatprep.subr.mxu0 0.0
    %1272 = vmatpush2.msra.mxu0 0.0
    %1273 = vmatprep.subr.mxu0 0.0
    %1274 = vmatpush2.msra.mxu0 0.0
    %1275 = vmatprep.subr.mxu0 0.0
    %1276 = vmatpush2.msra.mxu0 0.0
    %1277 = vmatprep.subr.mxu0 0.0
    %1278 = vmatpush2.msra.mxu0 0.0
    %1279 = vmatprep.subr.mxu0 0.0
    %1280 = vmatpush2.msra.mxu0 0.0
    %1281 = vmatprep.subr.mxu0 0.0
    %1282 = vmatpush2.msra.mxu0 0.0
    %1283 = vmatprep.subr.mxu0 0.0
    %1284 = vmatpush2.msra.mxu0 0.0
    %1285 = vmatprep.subr.mxu0 0.0
    %1286 = vmatpush2.msra.mxu0 0.0
    %1287 = vmatprep.mubr.f32.mxu0 0.0
    %1288 = vmatmul.mubr.f32.gmra.mxu0 %v1221
    %v1289 = vpop.f32.mrf.mxu0
    %v1290 = vadd.f32 0.0, %v1289
    %v1291 = vpop.f32.mrf.mxu0
    %1292 = vdwg.mxu0
    %v1294 = vsel %vm913, %v1023, 0
    %1296 = vmatprep.subr.mxu0 0.0
    %1297 = vmatpush1.msra.mxu0 0.0
    %1298 = vmatprep.subr.mxu0 0.0
    %1299 = vmatpush1.msra.mxu0 0.0
    %1300 = vmatprep.subr.mxu0 0.0
    %1301 = vmatpush1.msra.mxu0 0.0
    %1302 = vmatprep.subr.mxu0 0.0
    %1303 = vmatpush1.msra.mxu0 0.0
    %1304 = vmatprep.subr.mxu0 0.0
    %1305 = vmatpush1.msra.mxu0 0.0
    %1306 = vmatprep.subr.mxu0 0.0
    %1307 = vmatpush1.msra.mxu0 0.0
    %1308 = vmatprep.subr.mxu0 0.0
    %1309 = vmatpush1.msra.mxu0 0.0
    %1310 = vmatprep.subr.mxu0 0.0
    %1311 = vmatpush1.msra.mxu0 0.0
    %1312 = vmatprep.subr.mxu0 0.0
    %1313 = vmatpush1.msra.mxu0 0.0
    %1314 = vmatprep.subr.mxu0 0.0
    %1315 = vmatpush1.msra.mxu0 0.0
    %1316 = vmatprep.subr.mxu0 0.0
    %1317 = vmatpush1.msra.mxu0 0.0
    %1318 = vmatprep.subr.mxu0 0.0
    %1319 = vmatpush1.msra.mxu0 0.0
    %1320 = vmatprep.subr.mxu0 0.0
    %1321 = vmatpush1.msra.mxu0 0.0
    %1322 = vmatprep.subr.mxu0 0.0
    %1323 = vmatpush1.msra.mxu0 0.0
    %1324 = vmatprep.subr.mxu0 0.0
    %1325 = vmatpush1.msra.mxu0 0.0
    %1326 = vmatprep.subr.mxu0 0.0
    %1327 = vmatpush1.msra.mxu0 %v305
    %1328 = vmatprep.subr.mxu0 0.0
    %1329 = vmatpush2.msra.mxu0 0.0
    %1330 = vmatprep.subr.mxu0 0.0
    %1331 = vmatpush2.msra.mxu0 0.0
    %1332 = vmatprep.subr.mxu0 0.0
    %1333 = vmatpush2.msra.mxu0 0.0
    %1334 = vmatprep.subr.mxu0 0.0
    %1335 = vmatpush2.msra.mxu0 0.0
    %1336 = vmatprep.subr.mxu0 0.0
    %1337 = vmatpush2.msra.mxu0 0.0
    %1338 = vmatprep.subr.mxu0 0.0
    %1339 = vmatpush2.msra.mxu0 0.0
    %1340 = vmatprep.subr.mxu0 0.0
    %1341 = vmatpush2.msra.mxu0 0.0
    %1342 = vmatprep.subr.mxu0 0.0
    %1343 = vmatpush2.msra.mxu0 0.0
    %1344 = vmatprep.subr.mxu0 0.0
    %1345 = vmatpush2.msra.mxu0 0.0
    %1346 = vmatprep.subr.mxu0 0.0
    %1347 = vmatpush2.msra.mxu0 0.0
    %1348 = vmatprep.subr.mxu0 0.0
    %1349 = vmatpush2.msra.mxu0 0.0
    %1350 = vmatprep.subr.mxu0 0.0
    %1351 = vmatpush2.msra.mxu0 0.0
    %1352 = vmatprep.subr.mxu0 0.0
    %1353 = vmatpush2.msra.mxu0 0.0
    %1354 = vmatprep.subr.mxu0 0.0
    %1355 = vmatpush2.msra.mxu0 0.0
    %1356 = vmatprep.subr.mxu0 0.0
    %1357 = vmatpush2.msra.mxu0 0.0
    %1358 = vmatprep.subr.mxu0 0.0
    %1359 = vmatpush2.msra.mxu0 0.0
    %1360 = vmatprep.mubr.f32.mxu0 0.0
    %1361 = vmatmul.mubr.f32.gmra.mxu0 %v1294
    %v1362 = vpop.f32.mrf.mxu0
    %v1363 = vadd.f32 0.0, %v1362
    %v1364 = vpop.f32.mrf.mxu0
    %1365 = vdwg.mxu0
    %v1367 = vsel %vm913, %v1025, 0
    %1369 = vmatprep.subr.mxu0 0.0
    %1370 = vmatpush1.msra.mxu0 0.0
    %1371 = vmatprep.subr.mxu0 0.0
    %1372 = vmatpush1.msra.mxu0 0.0
    %1373 = vmatprep.subr.mxu0 0.0
    %1374 = vmatpush1.msra.mxu0 0.0
    %1375 = vmatprep.subr.mxu0 0.0
    %1376 = vmatpush1.msra.mxu0 0.0
    %1377 = vmatprep.subr.mxu0 0.0
    %1378 = vmatpush1.msra.mxu0 0.0
    %1379 = vmatprep.subr.mxu0 0.0
    %1380 = vmatpush1.msra.mxu0 0.0
    %1381 = vmatprep.subr.mxu0 0.0
    %1382 = vmatpush1.msra.mxu0 0.0
    %1383 = vmatprep.subr.mxu0 0.0
    %1384 = vmatpush1.msra.mxu0 0.0
    %1385 = vmatprep.subr.mxu0 0.0
    %1386 = vmatpush1.msra.mxu0 0.0
    %1387 = vmatprep.subr.mxu0 0.0
    %1388 = vmatpush1.msra.mxu0 0.0
    %1389 = vmatprep.subr.mxu0 0.0
    %1390 = vmatpush1.msra.mxu0 0.0
    %1391 = vmatprep.subr.mxu0 0.0
    %1392 = vmatpush1.msra.mxu0 0.0
    %1393 = vmatprep.subr.mxu0 0.0
    %1394 = vmatpush1.msra.mxu0 0.0
    %1395 = vmatprep.subr.mxu0 0.0
    %1396 = vmatpush1.msra.mxu0 0.0
    %1397 = vmatprep.subr.mxu0 0.0
    %1398 = vmatpush1.msra.mxu0 0.0
    %1399 = vmatprep.subr.mxu0 0.0
    %1400 = vmatpush1.msra.mxu0 %v311
    %1401 = vmatprep.subr.mxu0 0.0
    %1402 = vmatpush2.msra.mxu0 0.0
    %1403 = vmatprep.subr.mxu0 0.0
    %1404 = vmatpush2.msra.mxu0 0.0
    %1405 = vmatprep.subr.mxu0 0.0
    %1406 = vmatpush2.msra.mxu0 0.0
    %1407 = vmatprep.subr.mxu0 0.0
    %1408 = vmatpush2.msra.mxu0 0.0
    %1409 = vmatprep.subr.mxu0 0.0
    %1410 = vmatpush2.msra.mxu0 0.0
    %1411 = vmatprep.subr.mxu0 0.0
    %1412 = vmatpush2.msra.mxu0 0.0
    %1413 = vmatprep.subr.mxu0 0.0
    %1414 = vmatpush2.msra.mxu0 0.0
    %1415 = vmatprep.subr.mxu0 0.0
    %1416 = vmatpush2.msra.mxu0 0.0
    %1417 = vmatprep.subr.mxu0 0.0
    %1418 = vmatpush2.msra.mxu0 0.0
    %1419 = vmatprep.subr.mxu0 0.0
    %1420 = vmatpush2.msra.mxu0 0.0
    %1421 = vmatprep.subr.mxu0 0.0
    %1422 = vmatpush2.msra.mxu0 0.0
    %1423 = vmatprep.subr.mxu0 0.0
    %1424 = vmatpush2.msra.mxu0 0.0
    %1425 = vmatprep.subr.mxu0 0.0
    %1426 = vmatpush2.msra.mxu0 0.0
    %1427 = vmatprep.subr.mxu0 0.0
    %1428 = vmatpush2.msra.mxu0 0.0
    %1429 = vmatprep.subr.mxu0 0.0
    %1430 = vmatpush2.msra.mxu0 0.0
    %1431 = vmatprep.subr.mxu0 0.0
    %1432 = vmatpush2.msra.mxu0 0.0
    %1433 = vmatprep.mubr.f32.mxu0 0.0
    %1434 = vmatmul.mubr.f32.gmra.mxu0 %v1367
    %v1435 = vpop.f32.mrf.mxu0
    %v1436 = vadd.f32 0.0, %v1435
    %v1437 = vpop.f32.mrf.mxu0
    %1438 = vdwg.mxu0
    %v1440 = vsel %vm913, %v1027, 0
    %1442 = vmatprep.subr.mxu0 0.0
    %1443 = vmatpush1.msra.mxu0 0.0
    %1444 = vmatprep.subr.mxu0 0.0
    %1445 = vmatpush1.msra.mxu0 0.0
    %1446 = vmatprep.subr.mxu0 0.0
    %1447 = vmatpush1.msra.mxu0 0.0
    %1448 = vmatprep.subr.mxu0 0.0
    %1449 = vmatpush1.msra.mxu0 0.0
    %1450 = vmatprep.subr.mxu0 0.0
    %1451 = vmatpush1.msra.mxu0 0.0
    %1452 = vmatprep.subr.mxu0 0.0
    %1453 = vmatpush1.msra.mxu0 0.0
    %1454 = vmatprep.subr.mxu0 0.0
    %1455 = vmatpush1.msra.mxu0 0.0
    %1456 = vmatprep.subr.mxu0 0.0
    %1457 = vmatpush1.msra.mxu0 0.0
    %1458 = vmatprep.subr.mxu0 0.0
    %1459 = vmatpush1.msra.mxu0 0.0
    %1460 = vmatprep.subr.mxu0 0.0
    %1461 = vmatpush1.msra.mxu0 0.0
    %1462 = vmatprep.subr.mxu0 0.0
    %1463 = vmatpush1.msra.mxu0 0.0
    %1464 = vmatprep.subr.mxu0 0.0
    %1465 = vmatpush1.msra.mxu0 0.0
    %1466 = vmatprep.subr.mxu0 0.0
    %1467 = vmatpush1.msra.mxu0 0.0
    %1468 = vmatprep.subr.mxu0 0.0
    %1469 = vmatpush1.msra.mxu0 0.0
    %1470 = vmatprep.subr.mxu0 0.0
    %1471 = vmatpush1.msra.mxu0 0.0
    %1472 = vmatprep.subr.mxu0 0.0
    %1473 = vmatpush1.msra.mxu0 %v317
    %1474 = vmatprep.subr.mxu0 0.0
    %1475 = vmatpush2.msra.mxu0 0.0
    %1476 = vmatprep.subr.mxu0 0.0
    %1477 = vmatpush2.msra.mxu0 0.0
    %1478 = vmatprep.subr.mxu0 0.0
    %1479 = vmatpush2.msra.mxu0 0.0
    %1480 = vmatprep.subr.mxu0 0.0
    %1481 = vmatpush2.msra.mxu0 0.0
    %1482 = vmatprep.subr.mxu0 0.0
    %1483 = vmatpush2.msra.mxu0 0.0
    %1484 = vmatprep.subr.mxu0 0.0
    %1485 = vmatpush2.msra.mxu0 0.0
    %1486 = vmatprep.subr.mxu0 0.0
    %1487 = vmatpush2.msra.mxu0 0.0
    %1488 = vmatprep.subr.mxu0 0.0
    %1489 = vmatpush2.msra.mxu0 0.0
    %1490 = vmatprep.subr.mxu0 0.0
    %1491 = vmatpush2.msra.mxu0 0.0
    %1492 = vmatprep.subr.mxu0 0.0
    %1493 = vmatpush2.msra.mxu0 0.0
    %1494 = vmatprep.subr.mxu0 0.0
    %1495 = vmatpush2.msra.mxu0 0.0
    %1496 = vmatprep.subr.mxu0 0.0
    %1497 = vmatpush2.msra.mxu0 0.0
    %1498 = vmatprep.subr.mxu0 0.0
    %1499 = vmatpush2.msra.mxu0 0.0
    %1500 = vmatprep.subr.mxu0 0.0
    %1501 = vmatpush2.msra.mxu0 0.0
    %1502 = vmatprep.subr.mxu0 0.0
    %1503 = vmatpush2.msra.mxu0 0.0
    %1504 = vmatprep.subr.mxu0 0.0
    %1505 = vmatpush2.msra.mxu0 0.0
    %1506 = vmatprep.mubr.f32.mxu0 0.0
    %1507 = vmatmul.mubr.f32.gmra.mxu0 %v1440
    %v1508 = vpop.f32.mrf.mxu0
    %v1509 = vadd.f32 0.0, %v1508
    %v1510 = vpop.f32.mrf.mxu0
    %1511 = vdwg.mxu0
    %v1513 = vsel %vm913, %v1029, 0
    %1515 = vmatprep.subr.mxu0 0.0
    %1516 = vmatpush1.msra.mxu0 0.0
    %1517 = vmatprep.subr.mxu0 0.0
    %1518 = vmatpush1.msra.mxu0 0.0
    %1519 = vmatprep.subr.mxu0 0.0
    %1520 = vmatpush1.msra.mxu0 0.0
    %1521 = vmatprep.subr.mxu0 0.0
    %1522 = vmatpush1.msra.mxu0 0.0
    %1523 = vmatprep.subr.mxu0 0.0
    %1524 = vmatpush1.msra.mxu0 0.0
    %1525 = vmatprep.subr.mxu0 0.0
    %1526 = vmatpush1.msra.mxu0 0.0
    %1527 = vmatprep.subr.mxu0 0.0
    %1528 = vmatpush1.msra.mxu0 0.0
    %1529 = vmatprep.subr.mxu0 0.0
    %1530 = vmatpush1.msra.mxu0 0.0
    %1531 = vmatprep.subr.mxu0 0.0
    %1532 = vmatpush1.msra.mxu0 0.0
    %1533 = vmatprep.subr.mxu0 0.0
    %1534 = vmatpush1.msra.mxu0 0.0
    %1535 = vmatprep.subr.mxu0 0.0
    %1536 = vmatpush1.msra.mxu0 0.0
    %1537 = vmatprep.subr.mxu0 0.0
    %1538 = vmatpush1.msra.mxu0 0.0
    %1539 = vmatprep.subr.mxu0 0.0
    %1540 = vmatpush1.msra.mxu0 0.0
    %1541 = vmatprep.subr.mxu0 0.0
    %1542 = vmatpush1.msra.mxu0 0.0
    %1543 = vmatprep.subr.mxu0 0.0
    %1544 = vmatpush1.msra.mxu0 0.0
    %1545 = vmatprep.subr.mxu0 0.0
    %1546 = vmatpush1.msra.mxu0 %v323
    %1547 = vmatprep.subr.mxu0 0.0
    %1548 = vmatpush2.msra.mxu0 0.0
    %1549 = vmatprep.subr.mxu0 0.0
    %1550 = vmatpush2.msra.mxu0 0.0
    %1551 = vmatprep.subr.mxu0 0.0
    %1552 = vmatpush2.msra.mxu0 0.0
    %1553 = vmatprep.subr.mxu0 0.0
    %1554 = vmatpush2.msra.mxu0 0.0
    %1555 = vmatprep.subr.mxu0 0.0
    %1556 = vmatpush2.msra.mxu0 0.0
    %1557 = vmatprep.subr.mxu0 0.0
    %1558 = vmatpush2.msra.mxu0 0.0
    %1559 = vmatprep.subr.mxu0 0.0
    %1560 = vmatpush2.msra.mxu0 0.0
    %1561 = vmatprep.subr.mxu0 0.0
    %1562 = vmatpush2.msra.mxu0 0.0
    %1563 = vmatprep.subr.mxu0 0.0
    %1564 = vmatpush2.msra.mxu0 0.0
    %1565 = vmatprep.subr.mxu0 0.0
    %1566 = vmatpush2.msra.mxu0 0.0
    %1567 = vmatprep.subr.mxu0 0.0
    %1568 = vmatpush2.msra.mxu0 0.0
    %1569 = vmatprep.subr.mxu0 0.0
    %1570 = vmatpush2.msra.mxu0 0.0
    %1571 = vmatprep.subr.mxu0 0.0
    %1572 = vmatpush2.msra.mxu0 0.0
    %1573 = vmatprep.subr.mxu0 0.0
    %1574 = vmatpush2.msra.mxu0 0.0
    %1575 = vmatprep.subr.mxu0 0.0
    %1576 = vmatpush2.msra.mxu0 0.0
    %1577 = vmatprep.subr.mxu0 0.0
    %1578 = vmatpush2.msra.mxu0 0.0
    %1579 = vmatprep.mubr.f32.mxu0 0.0
    %1580 = vmatmul.mubr.f32.gmra.mxu0 %v1513
    %v1581 = vpop.f32.mrf.mxu0
    %v1582 = vadd.f32 0.0, %v1581
    %v1583 = vpop.f32.mrf.mxu0
    %1584 = vdwg.mxu0
    %v1586 = vsel %vm913, %v1031, 0
    %1588 = vmatprep.subr.mxu0 0.0
    %1589 = vmatpush1.msra.mxu0 0.0
    %1590 = vmatprep.subr.mxu0 0.0
    %1591 = vmatpush1.msra.mxu0 0.0
    %1592 = vmatprep.subr.mxu0 0.0
    %1593 = vmatpush1.msra.mxu0 0.0
    %1594 = vmatprep.subr.mxu0 0.0
    %1595 = vmatpush1.msra.mxu0 0.0
    %1596 = vmatprep.subr.mxu0 0.0
    %1597 = vmatpush1.msra.mxu0 0.0
    %1598 = vmatprep.subr.mxu0 0.0
    %1599 = vmatpush1.msra.mxu0 0.0
    %1600 = vmatprep.subr.mxu0 0.0
    %1601 = vmatpush1.msra.mxu0 0.0
    %1602 = vmatprep.subr.mxu0 0.0
    %1603 = vmatpush1.msra.mxu0 0.0
    %1604 = vmatprep.subr.mxu0 0.0
    %1605 = vmatpush1.msra.mxu0 0.0
    %1606 = vmatprep.subr.mxu0 0.0
    %1607 = vmatpush1.msra.mxu0 0.0
    %1608 = vmatprep.subr.mxu0 0.0
    %1609 = vmatpush1.msra.mxu0 0.0
    %1610 = vmatprep.subr.mxu0 0.0
    %1611 = vmatpush1.msra.mxu0 0.0
    %1612 = vmatprep.subr.mxu0 0.0
    %1613 = vmatpush1.msra.mxu0 0.0
    %1614 = vmatprep.subr.mxu0 0.0
    %1615 = vmatpush1.msra.mxu0 0.0
    %1616 = vmatprep.subr.mxu0 0.0
    %1617 = vmatpush1.msra.mxu0 0.0
    %1618 = vmatprep.subr.mxu0 0.0
    %1619 = vmatpush1.msra.mxu0 %v329
    %1620 = vmatprep.subr.mxu0 0.0
    %1621 = vmatpush2.msra.mxu0 0.0
    %1622 = vmatprep.subr.mxu0 0.0
    %1623 = vmatpush2.msra.mxu0 0.0
    %1624 = vmatprep.subr.mxu0 0.0
    %1625 = vmatpush2.msra.mxu0 0.0
    %1626 = vmatprep.subr.mxu0 0.0
    %1627 = vmatpush2.msra.mxu0 0.0
    %1628 = vmatprep.subr.mxu0 0.0
    %1629 = vmatpush2.msra.mxu0 0.0
    %1630 = vmatprep.subr.mxu0 0.0
    %1631 = vmatpush2.msra.mxu0 0.0
    %1632 = vmatprep.subr.mxu0 0.0
    %1633 = vmatpush2.msra.mxu0 0.0
    %1634 = vmatprep.subr.mxu0 0.0
    %1635 = vmatpush2.msra.mxu0 0.0
    %1636 = vmatprep.subr.mxu0 0.0
    %1637 = vmatpush2.msra.mxu0 0.0
    %1638 = vmatprep.subr.mxu0 0.0
    %1639 = vmatpush2.msra.mxu0 0.0
    %1640 = vmatprep.subr.mxu0 0.0
    %1641 = vmatpush2.msra.mxu0 0.0
    %1642 = vmatprep.subr.mxu0 0.0
    %1643 = vmatpush2.msra.mxu0 0.0
    %1644 = vmatprep.subr.mxu0 0.0
    %1645 = vmatpush2.msra.mxu0 0.0
    %1646 = vmatprep.subr.mxu0 0.0
    %1647 = vmatpush2.msra.mxu0 0.0
    %1648 = vmatprep.subr.mxu0 0.0
    %1649 = vmatpush2.msra.mxu0 0.0
    %1650 = vmatprep.subr.mxu0 0.0
    %1651 = vmatpush2.msra.mxu0 0.0
    %1652 = vmatprep.mubr.f32.mxu0 0.0
    %1653 = vmatmul.mubr.f32.gmra.mxu0 %v1586
    %v1654 = vpop.f32.mrf.mxu0
    %v1655 = vadd.f32 0.0, %v1654
    %v1656 = vpop.f32.mrf.mxu0
    %1657 = vdwg.mxu0
    %v1659 = vsel %vm913, %v1033, 0
    %1661 = vmatprep.subr.mxu0 0.0
    %1662 = vmatpush1.msra.mxu0 0.0
    %1663 = vmatprep.subr.mxu0 0.0
    %1664 = vmatpush1.msra.mxu0 0.0
    %1665 = vmatprep.subr.mxu0 0.0
    %1666 = vmatpush1.msra.mxu0 0.0
    %1667 = vmatprep.subr.mxu0 0.0
    %1668 = vmatpush1.msra.mxu0 0.0
    %1669 = vmatprep.subr.mxu0 0.0
    %1670 = vmatpush1.msra.mxu0 0.0
    %1671 = vmatprep.subr.mxu0 0.0
    %1672 = vmatpush1.msra.mxu0 0.0
    %1673 = vmatprep.subr.mxu0 0.0
    %1674 = vmatpush1.msra.mxu0 0.0
    %1675 = vmatprep.subr.mxu0 0.0
    %1676 = vmatpush1.msra.mxu0 0.0
    %1677 = vmatprep.subr.mxu0 0.0
    %1678 = vmatpush1.msra.mxu0 0.0
    %1679 = vmatprep.subr.mxu0 0.0
    %1680 = vmatpush1.msra.mxu0 0.0
    %1681 = vmatprep.subr.mxu0 0.0
    %1682 = vmatpush1.msra.mxu0 0.0
    %1683 = vmatprep.subr.mxu0 0.0
    %1684 = vmatpush1.msra.mxu0 0.0
    %1685 = vmatprep.subr.mxu0 0.0
    %1686 = vmatpush1.msra.mxu0 0.0
    %1687 = vmatprep.subr.mxu0 0.0
    %1688 = vmatpush1.msra.mxu0 0.0
    %1689 = vmatprep.subr.mxu0 0.0
    %1690 = vmatpush1.msra.mxu0 0.0
    %1691 = vmatprep.subr.mxu0 0.0
    %1692 = vmatpush1.msra.mxu0 %v335
    %1693 = vmatprep.subr.mxu0 0.0
    %1694 = vmatpush2.msra.mxu0 0.0
    %1695 = vmatprep.subr.mxu0 0.0
    %1696 = vmatpush2.msra.mxu0 0.0
    %1697 = vmatprep.subr.mxu0 0.0
    %1698 = vmatpush2.msra.mxu0 0.0
    %1699 = vmatprep.subr.mxu0 0.0
    %1700 = vmatpush2.msra.mxu0 0.0
    %1701 = vmatprep.subr.mxu0 0.0
    %1702 = vmatpush2.msra.mxu0 0.0
    %1703 = vmatprep.subr.mxu0 0.0
    %1704 = vmatpush2.msra.mxu0 0.0
    %1705 = vmatprep.subr.mxu0 0.0
    %1706 = vmatpush2.msra.mxu0 0.0
    %1707 = vmatprep.subr.mxu0 0.0
    %1708 = vmatpush2.msra.mxu0 0.0
    %1709 = vmatprep.subr.mxu0 0.0
    %1710 = vmatpush2.msra.mxu0 0.0
    %1711 = vmatprep.subr.mxu0 0.0
    %1712 = vmatpush2.msra.mxu0 0.0
    %1713 = vmatprep.subr.mxu0 0.0
    %1714 = vmatpush2.msra.mxu0 0.0
    %1715 = vmatprep.subr.mxu0 0.0
    %1716 = vmatpush2.msra.mxu0 0.0
    %1717 = vmatprep.subr.mxu0 0.0
    %1718 = vmatpush2.msra.mxu0 0.0
    %1719 = vmatprep.subr.mxu0 0.0
    %1720 = vmatpush2.msra.mxu0 0.0
    %1721 = vmatprep.subr.mxu0 0.0
    %1722 = vmatpush2.msra.mxu0 0.0
    %1723 = vmatprep.subr.mxu0 0.0
    %1724 = vmatpush2.msra.mxu0 0.0
    %1725 = vmatprep.mubr.f32.mxu0 0.0
    %1726 = vmatmul.mubr.f32.gmra.mxu0 %v1659
    %v1727 = vpop.f32.mrf.mxu0
    %v1728 = vadd.f32 0.0, %v1727
    %v1729 = vpop.f32.mrf.mxu0
    %1730 = vdwg.mxu0
    %v1731 = vadd.f32 %v1139, %v1217
    %v1732 = vadd.f32 %v1140, %v1290
    %v1733 = vadd.f32 %v1141, %v1363
    %v1734 = vadd.f32 %v1142, %v1436
    %v1735 = vadd.f32 %v1143, %v1509
    %v1736 = vadd.f32 %v1144, %v1582
    %v1737 = vadd.f32 %v1145, %v1655
    %v1738 = vadd.f32 %v1146, %v1728
    %1739 = vst [vmem:[#allocation5] sm:$0xff] %v1731
    %1740 = vst [vmem:[#allocation5 + $0x8] sm:$0xff] %v1732
    %1741 = vst [vmem:[#allocation5 + $0x10] sm:$0xff] %v1733
    %1742 = vst [vmem:[#allocation5 + $0x18] sm:$0xff] %v1734
    %1743 = vst [vmem:[#allocation5 + $0x20] sm:$0xff] %v1735
    %1744 = vst [vmem:[#allocation5 + $0x28] sm:$0xff] %v1736
    %1745 = vst [vmem:[#allocation5 + $0x30] sm:$0xff] %v1737
    %1746 = vst [vmem:[#allocation5 + $0x38] sm:$0xff] %v1738
    %1747 = vst.msk [vmem:[#allocation3] sm:$0xff] %vm1082, %v938
    %1748 = vst.msk [vmem:[#allocation3 + $0x8] sm:$0xff] %vm1082, %v939
    %1749 = vst.msk [vmem:[#allocation3 + $0x10] sm:$0xff] %vm1082, %v940
    %1750 = vst.msk [vmem:[#allocation3 + $0x18] sm:$0xff] %vm1082, %v941
    %1751 = vst.msk [vmem:[#allocation3 + $0x20] sm:$0xff] %vm1082, %v942
    %1752 = vst.msk [vmem:[#allocation3 + $0x28] sm:$0xff] %vm1082, %v943
    %1753 = vst.msk [vmem:[#allocation3 + $0x30] sm:$0xff] %vm1082, %v944
    %1754 = vst.msk [vmem:[#allocation3 + $0x38] sm:$0xff] %vm1082, %v945
    // Predicated region
    $region22: #{self_attention.1} parent=1 // pred_check
      %p1755 = pneg %p18
    $region23: #{self_attention.1} parent=1 // pred_check_branch
      %1757 = sbr.rel (%p1755) target = $region25
    $region24: #{self_attention.1} parent=1 // pred_region
      %v1758 = vld [vmem:[#allocation5] sm:$0xff]
      %v1759 = vld [vmem:[#allocation5 + $0x8] sm:$0xff]
      %v1760 = vld [vmem:[#allocation5 + $0x10] sm:$0xff]
      %v1761 = vld [vmem:[#allocation5 + $0x18] sm:$0xff]
      %v1762 = vld [vmem:[#allocation5 + $0x20] sm:$0xff]
      %v1763 = vld [vmem:[#allocation5 + $0x28] sm:$0xff]
      %v1764 = vld [vmem:[#allocation5 + $0x30] sm:$0xff]
      %v1765 = vld [vmem:[#allocation5 + $0x38] sm:$0xff]
      %v1766 = vld [vmem:[#allocation4] sm:$0xff]
      %v1767 = vld [vmem:[#allocation4 + $0x8] sm:$0xff]
      %v1768 = vld [vmem:[#allocation4 + $0x10] sm:$0xff]
      %v1769 = vld [vmem:[#allocation4 + $0x18] sm:$0xff]
      %v1770 = vld [vmem:[#allocation4 + $0x20] sm:$0xff]
      %v1771 = vld [vmem:[#allocation4 + $0x28] sm:$0xff]
      %v1772 = vld [vmem:[#allocation4 + $0x30] sm:$0xff]
      %v1773 = vld [vmem:[#allocation4 + $0x38] sm:$0xff]
      %1775 = vset.pattern.permute.xlu0 0
      %1776 = vperm.xlu0 %1775, %v1766
      %v1777 = vpop.permute.xlu0 %1776
      %1780 = vset.pattern.permute.xlu0 0
      %1781 = vperm.xlu0 %1780, %v1767
      %v1782 = vpop.permute.xlu0 %1781
      %1785 = vset.pattern.permute.xlu0 0
      %1786 = vperm.xlu0 %1785, %v1768
      %v1787 = vpop.permute.xlu0 %1786
      %1790 = vset.pattern.permute.xlu0 0
      %1791 = vperm.xlu0 %1790, %v1769
      %v1792 = vpop.permute.xlu0 %1791
      %1795 = vset.pattern.permute.xlu0 0
      %1796 = vperm.xlu0 %1795, %v1770
      %v1797 = vpop.permute.xlu0 %1796
      %1800 = vset.pattern.permute.xlu0 0
      %1801 = vperm.xlu0 %1800, %v1771
      %v1802 = vpop.permute.xlu0 %1801
      %1805 = vset.pattern.permute.xlu0 0
      %1806 = vperm.xlu0 %1805, %v1772
      %v1807 = vpop.permute.xlu0 %1806
      %1810 = vset.pattern.permute.xlu0 0
      %1811 = vperm.xlu0 %1810, %v1773
      %v1812 = vpop.permute.xlu0 %1811
      %v1814 = vrcp.pop %v1777
      %v1815 = vmul.f32 %v1758, %v1814
      %v1816 = vrcp.pop %v1782
      %v1817 = vmul.f32 %v1759, %v1816
      %v1818 = vrcp.pop %v1787
      %v1819 = vmul.f32 %v1760, %v1818
      %v1820 = vrcp.pop %v1792
      %v1821 = vmul.f32 %v1761, %v1820
      %v1822 = vrcp.pop %v1797
      %v1823 = vmul.f32 %v1762, %v1822
      %v1824 = vrcp.pop %v1802
      %v1825 = vmul.f32 %v1763, %v1824
      %v1826 = vrcp.pop %v1807
      %v1827 = vmul.f32 %v1764, %v1826
      %v1828 = vrcp.pop %v1812
      %v1829 = vmul.f32 %v1765, %v1828
      %1830 = vst [vmem:[#allocation6] sm:$0xff] %v1815
      %1831 = vst [vmem:[#allocation6 + $0x8] sm:$0xff] %v1817
      %1832 = vst [vmem:[#allocation6 + $0x10] sm:$0xff] %v1819
      %1833 = vst [vmem:[#allocation6 + $0x18] sm:$0xff] %v1821
      %1834 = vst [vmem:[#allocation6 + $0x20] sm:$0xff] %v1823
      %1835 = vst [vmem:[#allocation6 + $0x28] sm:$0xff] %v1825
      %1836 = vst [vmem:[#allocation6 + $0x30] sm:$0xff] %v1827
      %1837 = vst [vmem:[#allocation6 + $0x38] sm:$0xff] %v1829
    $region25: #{self_attention.1} parent=1 // pred_fallthru
      _
    // Predicated region
    $region26: #{self_attention.1} parent=1 // pred_check
      _
    $region27: #{self_attention.1} parent=1 // pred_check_branch
      %1839 = sbr.rel (0) target = $region29
    $region28: #{self_attention.1} parent=1 // pred_region
      %s1841 = ssub.s32 1024, 1024
      %1842 = vsyncadd [#allocation7], %s1841
      %s1843 = sshll.u32 [#allocation6], 4
      %s1844 = int_to_ptr.vmem [resolvable:$true] %s1843
      %1849 = dma.vmem_to_hbm [thread:$0]  %s1844, 1024, %s4, [#allocation7], 128, 128, 8
    $region29: #{self_attention.1} parent=1 // pred_fallthru
      _
    // Predicated region
    $region30: #{self_attention.1} parent=1 // pred_check
      _
    $region31: #{self_attention.1} parent=1 // pred_check_branch
      %1851 = sbr.rel (0) target = $region33
    $region32: #{self_attention.1} parent=1 // pred_region
      %1852 = dma.done [#allocation7], 1024
    $region33: #{self_attention.1} parent=1 // pred_fallthru
      _
    %1853 = vsyncpa [#allocation7], 1

</llo_original>
